<compile_context>
chip_gen: v7x
topology: tpu7x:2x2x1
jax: 0.10.0
libtpu: 0.0.40
codegen_flags: <defaults>
</compile_context>

<pallas_src>
import jax
import jax.numpy as jnp
from jax import lax
from jax.experimental import pallas as pl
from jax.experimental.pallas import tpu as pltpu

# ---------------- configuration (small synthetic shapes) ----------------
B = 2          # batch
C_IN = 4       # image channels
H = W = 16     # image spatial
PATCH = 4      # patch size -> 4x4 embedding grid
HP = H // PATCH
WP = W // PATCH
S = HP * WP    # number of image tokens (16)
D = 32         # embedding dim
CU = 16        # upscaled feature channels
HU, WU = 2 * HP, 2 * WP   # low-res mask size (8x8)
NT = 3         # prompt tokens per batch: [mask token, box corner 0, corner 1]


def _round8(n):
    return ((n + 7) // 8) * 8


# ---------------- packed-slab row layouts (static, module-level) ----------------
# Weight slab "w32" (bf16, 32 output columns), rows:
_W_PATCH = 0                                    # (C_IN*P*P, D)
_W_MLP2 = _W_PATCH + C_IN * PATCH * PATCH       # (2D, D)
_W_NECK = _W_MLP2 + 2 * D                       # (D, D)
_W_Q1 = _W_NECK + D
_W_V1 = _W_Q1 + D
_W_O1 = _W_V1 + D
_W_O2 = _W_O1 + D
_W32_ROWS = _W_O2 + D                           # 288

# Weight slab "w64" (bf16, 64 output columns), rows:
_W_KQ = 0                                       # wk1 | wq2 fused (D, 2D)
_W_KV2 = _W_KQ + D                              # wk2 | wv2 fused (D, 2D)
_W_MLP1 = _W_KV2 + D                            # (D, 2D)
_W_UP = _W_MLP1 + D                             # (D, 4*CU)
_W_HYP4 = _W_UP + D                             # (D, 4*CU) pre-tiled hypernet
_W64_ROWS = _W_HYP4 + D                         # 160

# Bias slab rows (each bias zero-padded to width 64):
(_B_PATCH, _B_NECK, _B_Q1, _B_KQ, _B_V1, _B_O1,
 _B_MLP1, _B_MLP2, _B_KV2, _B_O2, _B_UP, _B_HYP4) = range(12)

# Constant slab (f32, width 32), each block padded to a multiple of 8 rows:
_C_POS = 0                                      # (B*S, D)  dense positional enc.
_C_NOMASK = _C_POS + _round8(B * S)             # (1, D)    no-mask dense embed
_C_AMASK1 = _C_NOMASK + _round8(1)              # (B*NT, B*S) additive batch mask
_C_AMASK2 = _C_AMASK1 + _round8(B * NT)         # (B*S, B*NT)
_C_SELB = _C_AMASK2 + _round8(B * S)            # (B, B*S)   batch row-sum selector
_C_SELBT = _C_SELB + _round8(B)                 # (B*S, B)   batch broadcast selector
_C_TOKSEL = _C_SELBT + _round8(B * S)           # (B, B*NT)  mask-token selector
_C_SEG = _C_TOKSEL + _round8(B)                 # (4*CU, 4)  channel segment-sum
_C_ROWS = _C_SEG + _round8(4 * CU)              # 192


# ============================ fused Pallas kernel ============================

def _cellsam_fused_kernel(xp_ref, tok0_ref, w32_ref, w64_ref, b_ref, c_ref,
                          wqb_ref, out_ref):
    f32 = jnp.float32
    bf16 = jnp.bfloat16

    def mm(a, b):
        # MXU matmul: bf16 operands, f32 accumulation (native on v5e/v6e/v7x).
        return jnp.dot(a.astype(bf16), b.astype(bf16),
                       preferred_element_type=f32)

    def mm_nt(a, b):
        # a @ b^T via dot_general contracting the last axes (no in-kernel
        # transpose is materialized).
        return lax.dot_general(a.astype(bf16), b.astype(bf16),
                               (((1,), (1,)), ((), ())),
                               preferred_element_type=f32)

    def softmax_rows(s):
        # Row-max subtraction dropped (saves an XLU reduce on the serial path):
        # logits are O(1) with the 0.02-scale init and masked scores are exactly
        # -1e30 in f32, so exp() flushes them to 0.
        p = jnp.exp(s)
        denom = jnp.sum(p, axis=-1, keepdims=True)
        return p * pl.reciprocal(denom, approx=True)

    def bias32(i):
        return b_ref[i:i + 1, 0:D]

    def bias64(i):
        return b_ref[i:i + 1, 0:2 * D]

    scale = float(D) ** -0.5

    # ---------------- image encoder: patch embed (GELU) + neck ----------------
    feat = jax.nn.gelu(
        mm(xp_ref[...], w32_ref[_W_PATCH:_W_PATCH + C_IN * PATCH * PATCH, :])
        + bias32(_B_PATCH))
    img_emb = mm(feat, w32_ref[_W_NECK:_W_NECK + D, :]) + bias32(_B_NECK)

    src = img_emb + c_ref[_C_NOMASK:_C_NOMASK + 1, :]   # + dense no-mask prompt
    pos = c_ref[_C_POS:_C_POS + B * S, :]               # dense positional enc.
    src_pos = src + pos                                 # hoisted, reused by k1/q2
    tokens = tok0_ref[...]                              # (B*NT, D)

    # ---------------- two-way block: tokens -> image cross attention ----------
    q1 = mm(tokens, w32_ref[_W_Q1:_W_Q1 + D, :]) + bias32(_B_Q1)
    kq = mm(src_pos, w64_ref[_W_KQ:_W_KQ + D, :]) + bias64(_B_KQ)   # k1|q2 fused
    k1 = kq[:, 0:D]
    q2 = kq[:, D:2 * D]
    v1 = mm(src, w32_ref[_W_V1:_W_V1 + D, :]) + bias32(_B_V1)
    p1 = softmax_rows(mm_nt(q1, k1) * scale
                      + c_ref[_C_AMASK1:_C_AMASK1 + B * NT, :])     # (B*NT, B*S)
    tokens = tokens + mm(mm(p1, v1), w32_ref[_W_O1:_W_O1 + D, :]) + bias32(_B_O1)

    # ---------------- token MLP ----------------
    hmid = jax.nn.gelu(mm(tokens, w64_ref[_W_MLP1:_W_MLP1 + D, :])
                       + bias64(_B_MLP1))
    tokens = tokens + mm(hmid, w32_ref[_W_MLP2:_W_MLP2 + 2 * D, :]) + bias32(_B_MLP2)

    # ---------------- image -> tokens cross attention (fused k|v) -------------
    kv2 = mm(tokens, w64_ref[_W_KV2:_W_KV2 + D, :]) + bias64(_B_KV2)
    k2 = kv2[:, 0:D]
    v2 = kv2[:, D:2 * D]
    p2 = softmax_rows(mm_nt(q2, k2) * scale
                      + c_ref[_C_AMASK2:_C_AMASK2 + B * S, 0:B * NT])  # (B*S, B*NT)
    src = src + mm(mm(p2, v2), w32_ref[_W_O2:_W_O2 + D, :]) + bias32(_B_O2)

    # ---------------- 2x pixel-shuffle upscale projection (GELU) --------------
    up = jax.nn.gelu(mm(src, w64_ref[_W_UP:_W_UP + D, :]) + bias64(_B_UP))  # (B*S, 4*CU)

    # ---------------- hypernetwork on the mask token --------------------------
    # hyp_w pre-tiled to (D, 4*CU) so no lane-axis concatenate is needed.
    mask_tok = mm(c_ref[_C_TOKSEL:_C_TOKSEL + B, 0:B * NT], tokens)         # (B, D)
    hyper4 = mm(mask_tok, w64_ref[_W_HYP4:_W_HYP4 + D, :]) + bias64(_B_HYP4)  # (B, 4*CU)
    hyp_rows4 = mm(c_ref[_C_SELBT:_C_SELBT + B * S, 0:B], hyper4)           # (B*S, 4*CU)

    # ---------------- mask dot-product as a 0/1 segment-sum matmul ------------
    t1 = mm(up * hyp_rows4, c_ref[_C_SEG:_C_SEG + 4 * CU, 0:4])             # (B*S, 4)
    # t1[b*S + hp*WP + wp, dy*2+dx] == low_res_mask[b, 2*hp+dy, 2*wp+dx]

    # -------- pixel shuffle + bilinear-to-input-resolution (folded) -----------
    hw = H * W
    wb = wqb_ref[...]
    z = (t1[:, 0:1] * wb[:, 0:hw]
         + t1[:, 1:2] * wb[:, hw:2 * hw]
         + t1[:, 2:3] * wb[:, 2 * hw:3 * hw]
         + t1[:, 3:4] * wb[:, 3 * hw:4 * hw])                               # (B*S, H*W)
    out_ref[...] = mm(c_ref[_C_SELB:_C_SELB + B, :], z)                     # (B, H*W)


# ============================ JAX glue / wrapper ============================

def _pe_encode(coords_01, gauss):
    # coords_01: (..., 2) in [0, 1]  ->  (..., D) random-Fourier features
    c = 2.0 * coords_01 - 1.0
    c = c @ gauss                      # (..., D/2)
    c = 2.0 * jnp.pi * c
    return jnp.concatenate([jnp.sin(c), jnp.cos(c)], axis=-1)


def _bilinear_matrix(out_size, in_size):
    # PyTorch F.interpolate(mode='bilinear', align_corners=False) weights.
    scale = in_size / out_size
    dst = jnp.arange(out_size, dtype=jnp.float32)
    src = (dst + 0.5) * scale - 0.5
    src = jnp.maximum(src, 0.0)
    i0 = jnp.minimum(jnp.floor(src).astype(jnp.int32), in_size - 1)
    i1 = jnp.minimum(i0 + 1, in_size - 1)
    l1 = src - i0.astype(jnp.float32)
    l0 = 1.0 - l1
    rows = jnp.arange(out_size)
    A = jnp.zeros((out_size, in_size), jnp.float32)
    A = A.at[rows, i0].add(l0)
    A = A.at[rows, i1].add(l1)
    return A


def init_params(key):
    ks = jax.random.split(key, 19)
    w = lambda i, shape, s=0.02: s * jax.random.normal(ks[i], shape, jnp.float32)
    p = {
        # image encoder
        "patch_w": w(0, (C_IN * PATCH * PATCH, D)),
        "patch_b": jnp.zeros((D,), jnp.float32),
        "neck_w": w(1, (D, D)),
        "neck_b": jnp.zeros((D,), jnp.float32),
        # prompt encoder (frozen)
        "pe_gauss": jax.random.normal(ks[2], (2, D // 2), jnp.float32),
        "pt_emb_a": w(3, (D,), 1.0),
        "pt_emb_b": w(4, (D,), 1.0),
        "no_mask": w(5, (D,), 1.0),
        # mask decoder
        "mask_token": w(6, (D,), 1.0),
        "wq1": w(7, (D, D)), "wk1": w(8, (D, D)),
        "wv1": w(9, (D, D)), "wo1": w(10, (D, D)),
        "mlp_w1": w(11, (D, 2 * D)), "mlp_w2": w(12, (2 * D, D)),
        "wq2": w(13, (D, D)), "wk2": w(14, (D, D)),
        "wv2": w(15, (D, D)), "wo2": w(16, (D, D)),
        "up_w": w(17, (D, 4 * CU)),
        "up_b": jnp.zeros((4 * CU,), jnp.float32),
        "hyp_w": w(18, (D, CU)),
        "hyp_b": jnp.zeros((CU,), jnp.float32),
    }
    for name in ("wq1", "wk1", "wv1", "wo1", "wq2", "wk2", "wv2", "wo2",
                 "mlp_w1", "mlp_w2"):
        p[name + "_b"] = jnp.zeros((p[name].shape[1],), jnp.float32)
    return p


def build_constants(params):
    """Build the packed operand slabs ONCE (outside the per-call path)."""
    f32 = jnp.float32

    # -------- fused / pre-tiled weights --------
    wkq = jnp.concatenate([params["wk1"], params["wq2"]], axis=1)          # (D, 2D)
    wkq_b = jnp.concatenate([params["wk1_b"], params["wq2_b"]], axis=0)
    wkv2 = jnp.concatenate([params["wk2"], params["wv2"]], axis=1)         # (D, 2D)
    wkv2_b = jnp.concatenate([params["wk2_b"], params["wv2_b"]], axis=0)
    hyp_w4 = jnp.tile(params["hyp_w"], (1, 4))                             # (D, 4*CU)
    hyp_b4 = jnp.tile(params["hyp_b"], (4,))

    w32 = jnp.concatenate(
        [params["patch_w"], params["mlp_w2"], params["neck_w"], params["wq1"],
         params["wv1"], params["wo1"], params["wo2"]],
        axis=0).astype(jnp.bfloat16)                                       # (288, 32)
    w64 = jnp.concatenate(
        [wkq, wkv2, params["mlp_w1"], params["up_w"], hyp_w4],
        axis=0).astype(jnp.bfloat16)                                       # (160, 64)

    def brow(v):
        return jnp.pad(v.astype(f32), (0, 2 * D - v.shape[0])).reshape(1, 2 * D)

    bias = jnp.concatenate(
        [brow(params["patch_b"]), brow(params["neck_b"]), brow(params["wq1_b"]),
         brow(wkq_b), brow(params["wv1_b"]), brow(params["wo1_b"]),
         brow(params["mlp_w1_b"]), brow(params["mlp_w2_b"]), brow(wkv2_b),
         brow(params["wo2_b"]), brow(params["up_b"]), brow(hyp_b4)],
        axis=0)                                                            # (12, 64)

    # -------- dense positional encoding of the embedding grid (get_dense_pe) --
    ys = (jnp.arange(HP, dtype=f32) + 0.5) / HP
    xs = (jnp.arange(WP, dtype=f32) + 0.5) / WP
    gy, gx = jnp.meshgrid(ys, xs, indexing="ij")
    grid_pe = _pe_encode(jnp.stack([gx, gy], -1), params["pe_gauss"]).reshape(S, D)
    pos = jnp.tile(grid_pe, (B, 1))                                        # (B*S, D)
    no_mask = params["no_mask"].reshape(1, D)

    # -------- batch selectors / segment-sum / additive batch masks --------
    big_neg = jnp.float32(-1e30)
    amask1 = jnp.where(
        jnp.arange(B * NT)[:, None] // NT == jnp.arange(B * S)[None, :] // S,
        0.0, big_neg).astype(f32)                                          # (B*NT, B*S)
    amask2 = amask1.T                                                      # (B*S, B*NT)
    selb = (jnp.arange(B)[:, None]
            == jnp.arange(B * S)[None, :] // S).astype(f32)                # (B, B*S)
    selbt = selb.T                                                         # (B*S, B)
    tok_sel = (jnp.arange(B)[:, None] * NT
               == jnp.arange(B * NT)[None, :]).astype(f32)                 # (B, B*NT)
    seg = (jnp.arange(4 * CU)[:, None] // CU
           == jnp.arange(4)[None, :]).astype(f32)                          # (4*CU, 4)

    def cblock(a):
        r, c = a.shape
        return jnp.pad(a, ((0, _round8(r) - r), (0, D - c)))

    cslab = jnp.concatenate(
        [cblock(pos), cblock(no_mask), cblock(amask1), cblock(amask2),
         cblock(selb), cblock(selbt), cblock(tok_sel), cblock(seg)],
        axis=0)                                                            # (192, 32)
    assert cslab.shape == (_C_ROWS, D)
    assert w32.shape == (_W32_ROWS, D) and w64.shape == (_W64_ROWS, 2 * D)

    # -------- folded pixel-shuffle + bilinear-resize matrix --------
    Ah = _bilinear_matrix(H, HU)                                           # (H, HU)
    Aw = _bilinear_matrix(W, WU)                                           # (W, WU)
    hp = jnp.arange(S) // WP
    wp = jnp.arange(S) % WP
    blocks = []
    for q in range(4):                                                     # q = dy*2+dx
        dy, dx = q // 2, q % 2
        rh = Ah[:, 2 * hp + dy]                                            # (H, S)
        rw = Aw[:, 2 * wp + dx]                                            # (W, S)
        wq_s = (rh[:, None, :] * rw[None, :, :]).reshape(H * W, S).T       # (S, H*W)
        blocks.append(jnp.tile(wq_s, (B, 1)))                              # (B*S, H*W)
    wq_bil = jnp.concatenate(blocks, axis=1)                               # (B*S, 4*H*W)

    return {"w32": w32, "w64": w64, "bias": bias, "cslab": cslab, "wq_bil": wq_bil}


def cellsam_forward(params, consts, image, box):
    Bq, Cq, Hq, Wq = image.shape
    f32 = jnp.float32

    # ---- patch extraction: NCHW -> (B*S, C*P*P) (layout plumbing only) ----
    x = image.reshape(Bq, Cq, HP, PATCH, WP, PATCH)
    x = x.transpose(0, 2, 4, 1, 3, 5).reshape(Bq * S, Cq * PATCH * PATCH)

    # ---- prompt encoder (frozen): box-corner Fourier PE + point embeddings ----
    box_t = box.astype(f32)
    if box_t.ndim == 2:
        box_t = box_t[:, None, :]
    corners = box_t.reshape(Bq, 2, 2) + 0.5                 # (B, 2 corners, xy)
    corners = corners / jnp.array([Wq, Hq], f32)
    corner_pe = _pe_encode(corners, params["pe_gauss"])     # (B, 2, D)
    sparse_emb = corner_pe + jnp.stack(
        [params["pt_emb_a"], params["pt_emb_b"]])[None]     # (B, 2, D)
    tokens0 = jnp.concatenate(
        [jnp.broadcast_to(params["mask_token"][None, None, :], (Bq, 1, D)),
         sparse_emb], axis=1).reshape(Bq * NT, D)           # (B*3, D)

    vmem = pltpu.MemorySpace.VMEM
    out2d = pl.pallas_call(
        _cellsam_fused_kernel,
        out_shape=jax.ShapeDtypeStruct((Bq, Hq * Wq), f32),   # lane-dense output
        in_specs=[pl.BlockSpec(memory_space=vmem)] * 7,
        out_specs=pl.BlockSpec(memory_space=vmem),
        cost_estimate=pl.CostEstimate(flops=800_000, transcendentals=4_000,
                                      bytes_accessed=220_000),
    )(x, tokens0, consts["w32"], consts["w64"], consts["bias"],
      consts["cslab"], consts["wq_bil"])

    # reshape lane-dense (B, H*W) back to NCHW (B, 1, H, W)
    return out2d.reshape(Bq, 1, Hq, Wq)


# ================================ main ================================

if __name__ == "__main__":
    key = jax.random.PRNGKey(0)
    k_param, k_img = jax.random.split(key)
    params = init_params(k_param)
    consts = build_constants(params)         # packed slabs built once

    image = jax.random.normal(k_img, (B, C_IN, H, W), jnp.float32)
    box = jnp.array([[2.0, 3.0, 12.0, 13.0],
                     [1.0, 1.0, 10.0, 14.0]], jnp.float32)   # (B, 4)

    fwd = jax.jit(cellsam_forward)
    out = fwd(params, consts, image, box)
    out = jax.block_until_ready(out)
    assert out.shape == (B, 1, H, W), out.shape
    assert out.dtype == jnp.float32
    assert bool(jnp.isfinite(out).all())
    print("KERNEL_OK")
</pallas_src>

<mosaic_0001>
module attributes {stable_mosaic.version = 11 : i64} {
  func.func @_cellsam_fused_kernel(%arg0: memref<32x64xf32, #tpu.memory_space<vmem>>, %arg1: memref<6x32xf32, #tpu.memory_space<vmem>>, %arg2: memref<288x32xbf16, #tpu.memory_space<vmem>>, %arg3: memref<160x64xbf16, #tpu.memory_space<vmem>>, %arg4: memref<12x64xf32, #tpu.memory_space<vmem>>, %arg5: memref<192x32xf32, #tpu.memory_space<vmem>>, %arg6: memref<32x1024xf32, #tpu.memory_space<vmem>>, %arg7: memref<2x256xf32, #tpu.memory_space<vmem>>) attributes {dimension_semantics = [], scalar_prefetch = 0 : i64, scratch_operands = 0 : i64, tpu.core_type = #tpu.core_type<tc>} {
    %c0 = arith.constant 0 : index
    %c0_0 = arith.constant 0 : index
    %0 = vector.load %arg0[%c0, %c0_0] : memref<32x64xf32, #tpu.memory_space<vmem>>, vector<32x64xf32>
    %c0_1 = arith.constant 0 : index
    %c0_2 = arith.constant 0 : index
    %1 = vector.load %arg2[%c0_1, %c0_2] : memref<288x32xbf16, #tpu.memory_space<vmem>>, vector<64x32xbf16>
    %2 = arith.truncf %0 : vector<32x64xf32> to vector<32x64xbf16>
    %cst = arith.constant dense<0.000000e+00> : vector<32x32xf32>
    %3 = tpu.matmul %2, %1, %cst {dimension_numbers = #tpu.dot_dimension_numbers<[1], [0], [0], [1], [0, 0, 1, 1], [], []>} : vector<32x64xbf16>, vector<64x32xbf16>, vector<32x32xf32> -> vector<32x32xf32>
    %c0_3 = arith.constant 0 : index
    %c0_4 = arith.constant 0 : index
    %4 = vector.load %arg4[%c0_3, %c0_4] : memref<12x64xf32, #tpu.memory_space<vmem>>, vector<1x32xf32>
    %5 = vector.broadcast %4 : vector<1x32xf32> to vector<32x32xf32>
    %6 = arith.addf %3, %5 : vector<32x32xf32>
    %7 = arith.mulf %6, %6 : vector<32x32xf32>
    %8 = arith.mulf %6, %7 : vector<32x32xf32>
    %cst_5 = arith.constant 4.471500e-02 : f32
    %9 = vector.broadcast %cst_5 : f32 to vector<32x32xf32>
    %10 = arith.mulf %9, %8 : vector<32x32xf32>
    %11 = arith.addf %6, %10 : vector<32x32xf32>
    %cst_6 = arith.constant 0.797884583 : f32
    %12 = vector.broadcast %cst_6 : f32 to vector<32x32xf32>
    %13 = arith.mulf %12, %11 : vector<32x32xf32>
    %14 = math.tanh %13 : vector<32x32xf32>
    %cst_7 = arith.constant 1.000000e+00 : f32
    %15 = vector.broadcast %cst_7 : f32 to vector<32x32xf32>
    %16 = arith.addf %15, %14 : vector<32x32xf32>
    %cst_8 = arith.constant 5.000000e-01 : f32
    %17 = vector.broadcast %cst_8 : f32 to vector<32x32xf32>
    %18 = arith.mulf %17, %16 : vector<32x32xf32>
    %19 = arith.mulf %6, %18 : vector<32x32xf32>
    %c128 = arith.constant 128 : index
    %c0_9 = arith.constant 0 : index
    %20 = vector.load %arg2[%c128, %c0_9] : memref<288x32xbf16, #tpu.memory_space<vmem>>, vector<32x32xbf16>
    %21 = arith.truncf %19 : vector<32x32xf32> to vector<32x32xbf16>
    %cst_10 = arith.constant dense<0.000000e+00> : vector<32x32xf32>
    %22 = tpu.matmul %21, %20, %cst_10 {dimension_numbers = #tpu.dot_dimension_numbers<[1], [0], [0], [1], [0, 0, 1, 1], [], []>} : vector<32x32xbf16>, vector<32x32xbf16>, vector<32x32xf32> -> vector<32x32xf32>
    %c1 = arith.constant 1 : index
    %c0_11 = arith.constant 0 : index
    %23 = vector.load %arg4[%c1, %c0_11] : memref<12x64xf32, #tpu.memory_space<vmem>>, vector<1x32xf32>
    %24 = vector.broadcast %23 : vector<1x32xf32> to vector<32x32xf32>
    %25 = arith.addf %22, %24 : vector<32x32xf32>
    %c32 = arith.constant 32 : index
    %c0_12 = arith.constant 0 : index
    %26 = vector.load %arg5[%c32, %c0_12] : memref<192x32xf32, #tpu.memory_space<vmem>>, vector<1x32xf32>
    %27 = vector.broadcast %26 : vector<1x32xf32> to vector<32x32xf32>
    %28 = arith.addf %25, %27 : vector<32x32xf32>
    %c0_13 = arith.constant 0 : index
    %c0_14 = arith.constant 0 : index
    %29 = vector.load %arg5[%c0_13, %c0_14] : memref<192x32xf32, #tpu.memory_space<vmem>>, vector<32x32xf32>
    %30 = arith.addf %28, %29 : vector<32x32xf32>
    %c0_15 = arith.constant 0 : index
    %c0_16 = arith.constant 0 : index
    %31 = vector.load %arg1[%c0_15, %c0_16] : memref<6x32xf32, #tpu.memory_space<vmem>>, vector<6x32xf32>
    %c160 = arith.constant 160 : index
    %c0_17 = arith.constant 0 : index
    %32 = vector.load %arg2[%c160, %c0_17] : memref<288x32xbf16, #tpu.memory_space<vmem>>, vector<32x32xbf16>
    %33 = arith.truncf %31 : vector<6x32xf32> to vector<6x32xbf16>
    %cst_18 = arith.constant dense<0.000000e+00> : vector<6x32xf32>
    %34 = tpu.matmul %33, %32, %cst_18 {dimension_numbers = #tpu.dot_dimension_numbers<[1], [0], [0], [1], [0, 0, 1, 1], [], []>} : vector<6x32xbf16>, vector<32x32xbf16>, vector<6x32xf32> -> vector<6x32xf32>
    %c2 = arith.constant 2 : index
    %c0_19 = arith.constant 0 : index
    %35 = vector.load %arg4[%c2, %c0_19] : memref<12x64xf32, #tpu.memory_space<vmem>>, vector<1x32xf32>
    %36 = vector.broadcast %35 : vector<1x32xf32> to vector<6x32xf32>
    %37 = arith.addf %34, %36 : vector<6x32xf32>
    %c0_20 = arith.constant 0 : index
    %c0_21 = arith.constant 0 : index
    %38 = vector.load %arg3[%c0_20, %c0_21] : memref<160x64xbf16, #tpu.memory_space<vmem>>, vector<32x64xbf16>
    %39 = arith.truncf %30 : vector<32x32xf32> to vector<32x32xbf16>
    %cst_22 = arith.constant dense<0.000000e+00> : vector<32x64xf32>
    %40 = tpu.matmul %39, %38, %cst_22 {dimension_numbers = #tpu.dot_dimension_numbers<[1], [0], [0], [1], [0, 0, 1, 1], [], []>} : vector<32x32xbf16>, vector<32x64xbf16>, vector<32x64xf32> -> vector<32x64xf32>
    %c3 = arith.constant 3 : index
    %c0_23 = arith.constant 0 : index
    %41 = vector.load %arg4[%c3, %c0_23] : memref<12x64xf32, #tpu.memory_space<vmem>>, vector<1x64xf32>
    %42 = vector.broadcast %41 : vector<1x64xf32> to vector<32x64xf32>
    %43 = arith.addf %40, %42 : vector<32x64xf32>
    %44 = vector.extract_strided_slice %43 {offsets = [0, 0], sizes = [32, 32], strides = [1, 1]} : vector<32x64xf32> to vector<32x32xf32>
    %45 = vector.extract_strided_slice %43 {offsets = [0, 32], sizes = [32, 32], strides = [1, 1]} : vector<32x64xf32> to vector<32x32xf32>
    %c192 = arith.constant 192 : index
    %c0_24 = arith.constant 0 : index
    %46 = vector.load %arg2[%c192, %c0_24] : memref<288x32xbf16, #tpu.memory_space<vmem>>, vector<32x32xbf16>
    %47 = arith.truncf %28 : vector<32x32xf32> to vector<32x32xbf16>
    %cst_25 = arith.constant dense<0.000000e+00> : vector<32x32xf32>
    %48 = tpu.matmul %47, %46, %cst_25 {dimension_numbers = #tpu.dot_dimension_numbers<[1], [0], [0], [1], [0, 0, 1, 1], [], []>} : vector<32x32xbf16>, vector<32x32xbf16>, vector<32x32xf32> -> vector<32x32xf32>
    %c4 = arith.constant 4 : index
    %c0_26 = arith.constant 0 : index
    %49 = vector.load %arg4[%c4, %c0_26] : memref<12x64xf32, #tpu.memory_space<vmem>>, vector<1x32xf32>
    %50 = vector.broadcast %49 : vector<1x32xf32> to vector<32x32xf32>
    %51 = arith.addf %48, %50 : vector<32x32xf32>
    %52 = arith.truncf %37 : vector<6x32xf32> to vector<6x32xbf16>
    %53 = arith.truncf %44 : vector<32x32xf32> to vector<32x32xbf16>
    %cst_27 = arith.constant dense<0.000000e+00> : vector<6x32xf32>
    %54 = tpu.matmul %52, %53, %cst_27 {dimension_numbers = #tpu.dot_dimension_numbers<[1], [1], [0], [0], [0, 0, 1, 0], [], []>} : vector<6x32xbf16>, vector<32x32xbf16>, vector<6x32xf32> -> vector<6x32xf32>
    %cst_28 = arith.constant 0.176776692 : f32
    %55 = vector.broadcast %cst_28 : f32 to vector<6x32xf32>
    %56 = arith.mulf %54, %55 : vector<6x32xf32>
    %c40 = arith.constant 40 : index
    %c0_29 = arith.constant 0 : index
    %57 = vector.load %arg5[%c40, %c0_29] : memref<192x32xf32, #tpu.memory_space<vmem>>, vector<6x32xf32>
    %58 = arith.addf %56, %57 : vector<6x32xf32>
    %59 = math.exp %58 : vector<6x32xf32>
    %cst_30 = arith.constant dense<0.000000e+00> : vector<6xf32>
    %60 = vector.multi_reduction <add>, %59, %cst_30 [1] : vector<6x32xf32> to vector<6xf32>
    %61 = vector.shape_cast %60 : vector<6xf32> to vector<6x1xf32>
    %62 = tpu.reciprocal %61 {approx = true} : vector<6x1xf32> -> vector<6x1xf32>
    %63 = vector.broadcast %62 : vector<6x1xf32> to vector<6x32xf32>
    %64 = arith.mulf %59, %63 : vector<6x32xf32>
    %65 = arith.truncf %64 : vector<6x32xf32> to vector<6x32xbf16>
    %66 = arith.truncf %51 : vector<32x32xf32> to vector<32x32xbf16>
    %cst_31 = arith.constant dense<0.000000e+00> : vector<6x32xf32>
    %67 = tpu.matmul %65, %66, %cst_31 {dimension_numbers = #tpu.dot_dimension_numbers<[1], [0], [0], [1], [0, 0, 1, 1], [], []>} : vector<6x32xbf16>, vector<32x32xbf16>, vector<6x32xf32> -> vector<6x32xf32>
    %c224 = arith.constant 224 : index
    %c0_32 = arith.constant 0 : index
    %68 = vector.load %arg2[%c224, %c0_32] : memref<288x32xbf16, #tpu.memory_space<vmem>>, vector<32x32xbf16>
    %69 = arith.truncf %67 : vector<6x32xf32> to vector<6x32xbf16>
    %cst_33 = arith.constant dense<0.000000e+00> : vector<6x32xf32>
    %70 = tpu.matmul %69, %68, %cst_33 {dimension_numbers = #tpu.dot_dimension_numbers<[1], [0], [0], [1], [0, 0, 1, 1], [], []>} : vector<6x32xbf16>, vector<32x32xbf16>, vector<6x32xf32> -> vector<6x32xf32>
    %71 = arith.addf %31, %70 : vector<6x32xf32>
    %c5 = arith.constant 5 : index
    %c0_34 = arith.constant 0 : index
    %72 = vector.load %arg4[%c5, %c0_34] : memref<12x64xf32, #tpu.memory_space<vmem>>, vector<1x32xf32>
    %73 = vector.broadcast %72 : vector<1x32xf32> to vector<6x32xf32>
    %74 = arith.addf %71, %73 : vector<6x32xf32>
    %c64 = arith.constant 64 : index
    %c0_35 = arith.constant 0 : index
    %75 = vector.load %arg3[%c64, %c0_35] : memref<160x64xbf16, #tpu.memory_space<vmem>>, vector<32x64xbf16>
    %76 = arith.truncf %74 : vector<6x32xf32> to vector<6x32xbf16>
    %cst_36 = arith.constant dense<0.000000e+00> : vector<6x64xf32>
    %77 = tpu.matmul %76, %75, %cst_36 {dimension_numbers = #tpu.dot_dimension_numbers<[1], [0], [0], [1], [0, 0, 1, 1], [], []>} : vector<6x32xbf16>, vector<32x64xbf16>, vector<6x64xf32> -> vector<6x64xf32>
    %c6 = arith.constant 6 : index
    %c0_37 = arith.constant 0 : index
    %78 = vector.load %arg4[%c6, %c0_37] : memref<12x64xf32, #tpu.memory_space<vmem>>, vector<1x64xf32>
    %79 = vector.broadcast %78 : vector<1x64xf32> to vector<6x64xf32>
    %80 = arith.addf %77, %79 : vector<6x64xf32>
    %81 = arith.mulf %80, %80 : vector<6x64xf32>
    %82 = arith.mulf %80, %81 : vector<6x64xf32>
    %cst_38 = arith.constant 4.471500e-02 : f32
    %83 = vector.broadcast %cst_38 : f32 to vector<6x64xf32>
    %84 = arith.mulf %83, %82 : vector<6x64xf32>
    %85 = arith.addf %80, %84 : vector<6x64xf32>
    %cst_39 = arith.constant 0.797884583 : f32
    %86 = vector.broadcast %cst_39 : f32 to vector<6x64xf32>
    %87 = arith.mulf %86, %85 : vector<6x64xf32>
    %88 = math.tanh %87 : vector<6x64xf32>
    %cst_40 = arith.constant 1.000000e+00 : f32
    %89 = vector.broadcast %cst_40 : f32 to vector<6x64xf32>
    %90 = arith.addf %89, %88 : vector<6x64xf32>
    %cst_41 = arith.constant 5.000000e-01 : f32
    %91 = vector.broadcast %cst_41 : f32 to vector<6x64xf32>
    %92 = arith.mulf %91, %90 : vector<6x64xf32>
    %93 = arith.mulf %80, %92 : vector<6x64xf32>
    %c64_42 = arith.constant 64 : index
    %c0_43 = arith.constant 0 : index
    %94 = vector.load %arg2[%c64_42, %c0_43] : memref<288x32xbf16, #tpu.memory_space<vmem>>, vector<64x32xbf16>
    %95 = arith.truncf %93 : vector<6x64xf32> to vector<6x64xbf16>
    %cst_44 = arith.constant dense<0.000000e+00> : vector<6x32xf32>
    %96 = tpu.matmul %95, %94, %cst_44 {dimension_numbers = #tpu.dot_dimension_numbers<[1], [0], [0], [1], [0, 0, 1, 1], [], []>} : vector<6x64xbf16>, vector<64x32xbf16>, vector<6x32xf32> -> vector<6x32xf32>
    %97 = arith.addf %74, %96 : vector<6x32xf32>
    %c7 = arith.constant 7 : index
    %c0_45 = arith.constant 0 : index
    %98 = vector.load %arg4[%c7, %c0_45] : memref<12x64xf32, #tpu.memory_space<vmem>>, vector<1x32xf32>
    %99 = vector.broadcast %98 : vector<1x32xf32> to vector<6x32xf32>
    %100 = arith.addf %97, %99 : vector<6x32xf32>
    %c32_46 = arith.constant 32 : index
    %c0_47 = arith.constant 0 : index
    %101 = vector.load %arg3[%c32_46, %c0_47] : memref<160x64xbf16, #tpu.memory_space<vmem>>, vector<32x64xbf16>
    %102 = arith.truncf %100 : vector<6x32xf32> to vector<6x32xbf16>
    %cst_48 = arith.constant dense<0.000000e+00> : vector<6x64xf32>
    %103 = tpu.matmul %102, %101, %cst_48 {dimension_numbers = #tpu.dot_dimension_numbers<[1], [0], [0], [1], [0, 0, 1, 1], [], []>} : vector<6x32xbf16>, vector<32x64xbf16>, vector<6x64xf32> -> vector<6x64xf32>
    %c8 = arith.constant 8 : index
    %c0_49 = arith.constant 0 : index
    %104 = vector.load %arg4[%c8, %c0_49] : memref<12x64xf32, #tpu.memory_space<vmem>>, vector<1x64xf32>
    %105 = vector.broadcast %104 : vector<1x64xf32> to vector<6x64xf32>
    %106 = arith.addf %103, %105 : vector<6x64xf32>
    %107 = vector.extract_strided_slice %106 {offsets = [0, 0], sizes = [6, 32], strides = [1, 1]} : vector<6x64xf32> to vector<6x32xf32>
    %108 = vector.extract_strided_slice %106 {offsets = [0, 32], sizes = [6, 32], strides = [1, 1]} : vector<6x64xf32> to vector<6x32xf32>
    %109 = arith.truncf %45 : vector<32x32xf32> to vector<32x32xbf16>
    %110 = arith.truncf %107 : vector<6x32xf32> to vector<6x32xbf16>
    %cst_50 = arith.constant dense<0.000000e+00> : vector<32x6xf32>
    %111 = tpu.matmul %109, %110, %cst_50 {dimension_numbers = #tpu.dot_dimension_numbers<[1], [1], [0], [0], [0, 0, 1, 0], [], []>} : vector<32x32xbf16>, vector<6x32xbf16>, vector<32x6xf32> -> vector<32x6xf32>
    %cst_51 = arith.constant 0.176776692 : f32
    %112 = vector.broadcast %cst_51 : f32 to vector<32x6xf32>
    %113 = arith.mulf %111, %112 : vector<32x6xf32>
    %c48 = arith.constant 48 : index
    %c0_52 = arith.constant 0 : index
    %114 = vector.load %arg5[%c48, %c0_52] : memref<192x32xf32, #tpu.memory_space<vmem>>, vector<32x6xf32>
    %115 = arith.addf %113, %114 : vector<32x6xf32>
    %116 = math.exp %115 : vector<32x6xf32>
    %cst_53 = arith.constant dense<0.000000e+00> : vector<32xf32>
    %117 = vector.multi_reduction <add>, %116, %cst_53 [1] : vector<32x6xf32> to vector<32xf32>
    %118 = vector.shape_cast %117 : vector<32xf32> to vector<32x1xf32>
    %119 = tpu.reciprocal %118 {approx = true} : vector<32x1xf32> -> vector<32x1xf32>
    %120 = vector.broadcast %119 : vector<32x1xf32> to vector<32x6xf32>
    %121 = arith.mulf %116, %120 : vector<32x6xf32>
    %122 = arith.truncf %121 : vector<32x6xf32> to vector<32x6xbf16>
    %123 = arith.truncf %108 : vector<6x32xf32> to vector<6x32xbf16>
    %cst_54 = arith.constant dense<0.000000e+00> : vector<32x32xf32>
    %124 = tpu.matmul %122, %123, %cst_54 {dimension_numbers = #tpu.dot_dimension_numbers<[1], [0], [0], [1], [0, 0, 1, 1], [], []>} : vector<32x6xbf16>, vector<6x32xbf16>, vector<32x32xf32> -> vector<32x32xf32>
    %c256 = arith.constant 256 : index
    %c0_55 = arith.constant 0 : index
    %125 = vector.load %arg2[%c256, %c0_55] : memref<288x32xbf16, #tpu.memory_space<vmem>>, vector<32x32xbf16>
    %126 = arith.truncf %124 : vector<32x32xf32> to vector<32x32xbf16>
    %cst_56 = arith.constant dense<0.000000e+00> : vector<32x32xf32>
    %127 = tpu.matmul %126, %125, %cst_56 {dimension_numbers = #tpu.dot_dimension_numbers<[1], [0], [0], [1], [0, 0, 1, 1], [], []>} : vector<32x32xbf16>, vector<32x32xbf16>, vector<32x32xf32> -> vector<32x32xf32>
    %128 = arith.addf %28, %127 : vector<32x32xf32>
    %c9 = arith.constant 9 : index
    %c0_57 = arith.constant 0 : index
    %129 = vector.load %arg4[%c9, %c0_57] : memref<12x64xf32, #tpu.memory_space<vmem>>, vector<1x32xf32>
    %130 = vector.broadcast %129 : vector<1x32xf32> to vector<32x32xf32>
    %131 = arith.addf %128, %130 : vector<32x32xf32>
    %c96 = arith.constant 96 : index
    %c0_58 = arith.constant 0 : index
    %132 = vector.load %arg3[%c96, %c0_58] : memref<160x64xbf16, #tpu.memory_space<vmem>>, vector<32x64xbf16>
    %133 = arith.truncf %131 : vector<32x32xf32> to vector<32x32xbf16>
    %cst_59 = arith.constant dense<0.000000e+00> : vector<32x64xf32>
    %134 = tpu.matmul %133, %132, %cst_59 {dimension_numbers = #tpu.dot_dimension_numbers<[1], [0], [0], [1], [0, 0, 1, 1], [], []>} : vector<32x32xbf16>, vector<32x64xbf16>, vector<32x64xf32> -> vector<32x64xf32>
    %c10 = arith.constant 10 : index
    %c0_60 = arith.constant 0 : index
    %135 = vector.load %arg4[%c10, %c0_60] : memref<12x64xf32, #tpu.memory_space<vmem>>, vector<1x64xf32>
    %136 = vector.broadcast %135 : vector<1x64xf32> to vector<32x64xf32>
    %137 = arith.addf %134, %136 : vector<32x64xf32>
    %138 = arith.mulf %137, %137 : vector<32x64xf32>
    %139 = arith.mulf %137, %138 : vector<32x64xf32>
    %cst_61 = arith.constant 4.471500e-02 : f32
    %140 = vector.broadcast %cst_61 : f32 to vector<32x64xf32>
    %141 = arith.mulf %140, %139 : vector<32x64xf32>
    %142 = arith.addf %137, %141 : vector<32x64xf32>
    %cst_62 = arith.constant 0.797884583 : f32
    %143 = vector.broadcast %cst_62 : f32 to vector<32x64xf32>
    %144 = arith.mulf %143, %142 : vector<32x64xf32>
    %145 = math.tanh %144 : vector<32x64xf32>
    %cst_63 = arith.constant 1.000000e+00 : f32
    %146 = vector.broadcast %cst_63 : f32 to vector<32x64xf32>
    %147 = arith.addf %146, %145 : vector<32x64xf32>
    %cst_64 = arith.constant 5.000000e-01 : f32
    %148 = vector.broadcast %cst_64 : f32 to vector<32x64xf32>
    %149 = arith.mulf %148, %147 : vector<32x64xf32>
    %150 = arith.mulf %137, %149 : vector<32x64xf32>
    %c120 = arith.constant 120 : index
    %c0_65 = arith.constant 0 : index
    %151 = vector.load %arg5[%c120, %c0_65] : memref<192x32xf32, #tpu.memory_space<vmem>>, vector<2x6xf32>
    %152 = arith.truncf %151 : vector<2x6xf32> to vector<2x6xbf16>
    %153 = arith.truncf %100 : vector<6x32xf32> to vector<6x32xbf16>
    %cst_66 = arith.constant dense<0.000000e+00> : vector<2x32xf32>
    %154 = tpu.matmul %152, %153, %cst_66 {dimension_numbers = #tpu.dot_dimension_numbers<[1], [0], [0], [1], [0, 0, 1, 1], [], []>} : vector<2x6xbf16>, vector<6x32xbf16>, vector<2x32xf32> -> vector<2x32xf32>
    %c128_67 = arith.constant 128 : index
    %c0_68 = arith.constant 0 : index
    %155 = vector.load %arg3[%c128_67, %c0_68] : memref<160x64xbf16, #tpu.memory_space<vmem>>, vector<32x64xbf16>
    %156 = arith.truncf %154 : vector<2x32xf32> to vector<2x32xbf16>
    %cst_69 = arith.constant dense<0.000000e+00> : vector<2x64xf32>
    %157 = tpu.matmul %156, %155, %cst_69 {dimension_numbers = #tpu.dot_dimension_numbers<[1], [0], [0], [1], [0, 0, 1, 1], [], []>} : vector<2x32xbf16>, vector<32x64xbf16>, vector<2x64xf32> -> vector<2x64xf32>
    %c11 = arith.constant 11 : index
    %c0_70 = arith.constant 0 : index
    %158 = vector.load %arg4[%c11, %c0_70] : memref<12x64xf32, #tpu.memory_space<vmem>>, vector<1x64xf32>
    %159 = vector.broadcast %158 : vector<1x64xf32> to vector<2x64xf32>
    %160 = arith.addf %157, %159 : vector<2x64xf32>
    %c88 = arith.constant 88 : index
    %c0_71 = arith.constant 0 : index
    %161 = vector.load %arg5[%c88, %c0_71] : memref<192x32xf32, #tpu.memory_space<vmem>>, vector<32x2xf32>
    %162 = arith.truncf %161 : vector<32x2xf32> to vector<32x2xbf16>
    %163 = arith.truncf %160 : vector<2x64xf32> to vector<2x64xbf16>
    %cst_72 = arith.constant dense<0.000000e+00> : vector<32x64xf32>
    %164 = tpu.matmul %162, %163, %cst_72 {dimension_numbers = #tpu.dot_dimension_numbers<[1], [0], [0], [1], [0, 0, 1, 1], [], []>} : vector<32x2xbf16>, vector<2x64xbf16>, vector<32x64xf32> -> vector<32x64xf32>
    %165 = arith.mulf %150, %164 : vector<32x64xf32>
    %c128_73 = arith.constant 128 : index
    %c0_74 = arith.constant 0 : index
    %166 = vector.load %arg5[%c128_73, %c0_74] : memref<192x32xf32, #tpu.memory_space<vmem>>, vector<64x4xf32>
    %167 = arith.truncf %165 : vector<32x64xf32> to vector<32x64xbf16>
    %168 = arith.truncf %166 : vector<64x4xf32> to vector<64x4xbf16>
    %cst_75 = arith.constant dense<0.000000e+00> : vector<32x4xf32>
    %169 = tpu.matmul %167, %168, %cst_75 {dimension_numbers = #tpu.dot_dimension_numbers<[1], [0], [0], [1], [0, 0, 1, 1], [], []>} : vector<32x64xbf16>, vector<64x4xbf16>, vector<32x4xf32> -> vector<32x4xf32>
    %c0_76 = arith.constant 0 : index
    %c0_77 = arith.constant 0 : index
    %170 = vector.load %arg6[%c0_76, %c0_77] : memref<32x1024xf32, #tpu.memory_space<vmem>>, vector<32x1024xf32>
    %171 = vector.extract_strided_slice %169 {offsets = [0, 0], sizes = [32, 1], strides = [1, 1]} : vector<32x4xf32> to vector<32x1xf32>
    %172 = vector.extract_strided_slice %170 {offsets = [0, 0], sizes = [32, 256], strides = [1, 1]} : vector<32x1024xf32> to vector<32x256xf32>
    %173 = vector.broadcast %171 : vector<32x1xf32> to vector<32x256xf32>
    %174 = arith.mulf %173, %172 : vector<32x256xf32>
    %175 = vector.extract_strided_slice %169 {offsets = [0, 1], sizes = [32, 1], strides = [1, 1]} : vector<32x4xf32> to vector<32x1xf32>
    %176 = vector.extract_strided_slice %170 {offsets = [0, 256], sizes = [32, 256], strides = [1, 1]} : vector<32x1024xf32> to vector<32x256xf32>
    %177 = vector.broadcast %175 : vector<32x1xf32> to vector<32x256xf32>
    %178 = arith.mulf %177, %176 : vector<32x256xf32>
    %179 = arith.addf %174, %178 : vector<32x256xf32>
    %180 = vector.extract_strided_slice %169 {offsets = [0, 2], sizes = [32, 1], strides = [1, 1]} : vector<32x4xf32> to vector<32x1xf32>
    %181 = vector.extract_strided_slice %170 {offsets = [0, 512], sizes = [32, 256], strides = [1, 1]} : vector<32x1024xf32> to vector<32x256xf32>
    %182 = vector.broadcast %180 : vector<32x1xf32> to vector<32x256xf32>
    %183 = arith.mulf %182, %181 : vector<32x256xf32>
    %184 = arith.addf %179, %183 : vector<32x256xf32>
    %185 = vector.extract_strided_slice %169 {offsets = [0, 3], sizes = [32, 1], strides = [1, 1]} : vector<32x4xf32> to vector<32x1xf32>
    %186 = vector.extract_strided_slice %170 {offsets = [0, 768], sizes = [32, 256], strides = [1, 1]} : vector<32x1024xf32> to vector<32x256xf32>
    %187 = vector.broadcast %185 : vector<32x1xf32> to vector<32x256xf32>
    %188 = arith.mulf %187, %186 : vector<32x256xf32>
    %189 = arith.addf %184, %188 : vector<32x256xf32>
    %c80 = arith.constant 80 : index
    %c0_78 = arith.constant 0 : index
    %190 = vector.load %arg5[%c80, %c0_78] : memref<192x32xf32, #tpu.memory_space<vmem>>, vector<2x32xf32>
    %191 = arith.truncf %190 : vector<2x32xf32> to vector<2x32xbf16>
    %192 = arith.truncf %189 : vector<32x256xf32> to vector<32x256xbf16>
    %cst_79 = arith.constant dense<0.000000e+00> : vector<2x256xf32>
    %193 = tpu.matmul %191, %192, %cst_79 {dimension_numbers = #tpu.dot_dimension_numbers<[1], [0], [0], [1], [0, 0, 1, 1], [], []>} : vector<2x32xbf16>, vector<32x256xbf16>, vector<2x256xf32> -> vector<2x256xf32>
    %c0_80 = arith.constant 0 : index
    %c0_81 = arith.constant 0 : index
    %194 = vector.load %arg7[%c0_80, %c0_81] : memref<2x256xf32, #tpu.memory_space<vmem>>, vector<2x256xf32>
    tpu.vector_store %arg7[%c0_80, %c0_81], %193 {strides = array<i32>} : memref<2x256xf32, #tpu.memory_space<vmem>>, vector<2x256xf32>,
    return
  }
}

</mosaic_0001>

<llo_original>
// kernel: cellsam_forward.1
$region0: #{cellsam_forward.1}
  #allocation0 [shape = 'u32[]', space=smem, size = 0x4, offset = 0x4, fixed_abs, tag = 'smem constant byte address 0x4 - core index']
  #allocation1 [shape = 'u32[144,128]{1,0:T(1,128)}', space=vmem, size = 0x12000, scoped, tag = 'internal scratch']
  %s0 = inlined_call_operand.vmem [shape: f32[32,64], index: 0, kind: input, shape index: {}]
  %s1 = inlined_call_operand.vmem [shape: f32[6,32], index: 1, kind: input, shape index: {}]
  %s2 = inlined_call_operand.vmem [shape: bf16[288,32], index: 2, kind: input, shape index: {}]
  %s3 = inlined_call_operand.vmem [shape: bf16[160,64], index: 3, kind: input, shape index: {}]
  %s4 = inlined_call_operand.vmem [shape: f32[12,64], index: 4, kind: input, shape index: {}]
  %s5 = inlined_call_operand.vmem [shape: f32[192,32], index: 5, kind: input, shape index: {}]
  %s6 = inlined_call_operand.vmem [shape: f32[32,1024], index: 6, kind: input, shape index: {}]
  %s7 = inlined_call_operand.vmem [shape: f32[2,256], index: 7, kind: output, shape index: {}]
  %s8 = sld [smem:[#allocation0]]
  $region38: #{cellsam_forward.1} parent=0
    _
  %s10 = ssub.s32 1, %s8
  %s11 = scalar_select 0, %s10, %s8
  // Predicated region
  $region2: #{cellsam_forward.1} parent=0 // pred_check
    _
  $region3: #{cellsam_forward.1} parent=0 // pred_check_branch
    %13 = sbr.rel (0) target = $region5
  $region4: #{cellsam_forward.1} parent=0 // pred_region
    _
  $region5: #{cellsam_forward.1} parent=0 // pred_fallthru
    _
  // Predicated region
  $region6: #{cellsam_forward.1} parent=0 // pred_check
    _
  $region7: #{cellsam_forward.1} parent=0 // pred_check_branch
    %15 = sbr.rel (0) target = $region9
  $region8: #{cellsam_forward.1} parent=0 // pred_region
    _
  $region9: #{cellsam_forward.1} parent=0 // pred_fallthru
    _
  // Predicated region
  $region10: #{cellsam_forward.1} parent=0 // pred_check
    _
  $region11: #{cellsam_forward.1} parent=0 // pred_check_branch
    %17 = sbr.rel (0) target = $region13
  $region12: #{cellsam_forward.1} parent=0 // pred_region
    _
  $region13: #{cellsam_forward.1} parent=0 // pred_fallthru
    _
  // Predicated region
  $region14: #{cellsam_forward.1} parent=0 // pred_check
    _
  $region15: #{cellsam_forward.1} parent=0 // pred_check_branch
    %19 = sbr.rel (0) target = $region17
  $region16: #{cellsam_forward.1} parent=0 // pred_region
    _
  $region17: #{cellsam_forward.1} parent=0 // pred_fallthru
    _
  // Predicated region
  $region18: #{cellsam_forward.1} parent=0 // pred_check
    _
  $region19: #{cellsam_forward.1} parent=0 // pred_check_branch
    %21 = sbr.rel (0) target = $region21
  $region20: #{cellsam_forward.1} parent=0 // pred_region
    _
  $region21: #{cellsam_forward.1} parent=0 // pred_fallthru
    _
  // Predicated region
  $region22: #{cellsam_forward.1} parent=0 // pred_check
    _
  $region23: #{cellsam_forward.1} parent=0 // pred_check_branch
    %23 = sbr.rel (0) target = $region25
  $region24: #{cellsam_forward.1} parent=0 // pred_region
    _
  $region25: #{cellsam_forward.1} parent=0 // pred_fallthru
    _
  // Predicated region
  $region26: #{cellsam_forward.1} parent=0 // pred_check
    _
  $region27: #{cellsam_forward.1} parent=0 // pred_check_branch
    %25 = sbr.rel (0) target = $region29
  $region28: #{cellsam_forward.1} parent=0 // pred_region
    _
  $region29: #{cellsam_forward.1} parent=0 // pred_fallthru
    _
  %v27 = vld [vmem:[%s0] sm:$0xff]
  %v28 = vld [vmem:[%s0 + $0x8] sm:$0xff]
  %v29 = vld [vmem:[%s0 + $0x10] sm:$0xff]
  %v30 = vld [vmem:[%s0 + $0x18] sm:$0xff]
  %v31 = vld [vmem:[%s2] sm:$0xf]
  %v32 = vld [vmem:[%s2 + $0x4] sm:$0xf]
  %v33 = vld [vmem:[%s2 + $0x8] sm:$0xf]
  %v34 = vld [vmem:[%s2 + $0xc] sm:$0xf]
  %v35 = vld [vmem:[%s2 + $0x10] sm:$0xf]
  %v36 = vld [vmem:[%s2 + $0x14] sm:$0xf]
  %v37 = vld [vmem:[%s2 + $0x18] sm:$0xf]
  %v38 = vld [vmem:[%s2 + $0x1c] sm:$0xf]
  %v39 = vpack.c.bf16 %v28, %v27
  %v40 = vpack.c.bf16 %v30, %v29
  %v41 = vld [vmem:[%s4] sm:$0x1]
  %v42 = vlaneseq
  %v43 = vshrl.u32 %v42, 7
  %v44 = vsub.s32 0, %v43
  %v45 = vrot.slane %v41, %v44
  %v54 = vunpack.c.l.b16 %v31
  %v55 = vunpack.c.l.b16 %v32
  %v56 = vunpack.c.l.b16 %v33
  %v57 = vunpack.c.l.b16 %v34
  %v58 = vunpack.c.l.b16 %v35
  %v59 = vunpack.c.l.b16 %v36
  %v60 = vunpack.c.l.b16 %v37
  %v61 = vunpack.c.l.b16 %v38
  %v62 = vpack.c.b16 %v55, %v54
  %v63 = vpack.c.b16 %v57, %v56
  %v64 = vpack.c.b16 %v59, %v58
  %v65 = vpack.c.b16 %v61, %v60
  %vm70 = vcmask 523264
  %v72 = vsel %vm70, %v39, 0
  %v75 = vsel %vm70, %v40, 0
  %77 = vmatprep.subr.bf16.mxu0 0
  %78 = vmatpush1.bf16.msra.mxu0 %v62
  %79 = vmatprep.subr.bf16.mxu0 0
  %80 = vmatpush1.bf16.msra.mxu0 %v63
  %81 = vmatprep.subr.bf16.mxu0 0
  %82 = vmatpush1.bf16.msra.mxu0 %v64
  %83 = vmatprep.subr.bf16.mxu0 0
  %84 = vmatpush1.bf16.msra.mxu0 %v65
  %85 = vmatprep.subr.bf16.mxu0 0
  %86 = vmatpush1.bf16.msra.mxu0 0
  %87 = vmatprep.subr.bf16.mxu0 0
  %88 = vmatpush1.bf16.msra.mxu0 0
  %89 = vmatprep.subr.bf16.mxu0 0
  %90 = vmatpush1.bf16.msra.mxu0 0
  %91 = vmatprep.subr.bf16.mxu0 0
  %92 = vmatpush1.bf16.msra.mxu0 0
  %93 = vmatprep.subr.bf16.mxu0 0
  %94 = vmatpush1.bf16.msra.mxu0 0
  %95 = vmatprep.subr.bf16.mxu0 0
  %96 = vmatpush1.bf16.msra.mxu0 0
  %97 = vmatprep.subr.bf16.mxu0 0
  %98 = vmatpush1.bf16.msra.mxu0 0
  %99 = vmatprep.subr.bf16.mxu0 0
  %100 = vmatpush1.bf16.msra.mxu0 0
  %101 = vmatprep.subr.bf16.mxu0 0
  %102 = vmatpush1.bf16.msra.mxu0 0
  %103 = vmatprep.subr.bf16.mxu0 0
  %104 = vmatpush1.bf16.msra.mxu0 0
  %105 = vmatprep.subr.bf16.mxu0 0
  %106 = vmatpush1.bf16.msra.mxu0 0
  %107 = vmatprep.subr.bf16.mxu0 0
  %108 = vmatpush1.bf16.msra.mxu0 0
  %109 = vmatprep.mubr.bf16.mxu0 0
  %110 = vmatmul.mubr.bf16.gmra.mrb[0].mxu0 %v72
  %v111 = vpop.f32.mrb[0].mxu0
  %v112 = vadd.f32 %v45, %v111
  %v113 = vpop.f32.mrb[0].mxu0
  %v114 = vpop.f32.mrb[0].mxu0
  %v115 = vadd.f32 %v45, %v114
  %v116 = vpop.f32.mrb[0].mxu0
  %117 = vmatprep.mubr.bf16.mxu0 0
  %118 = vmatmul.mubr.bf16.gmra.mrb[0].mxu0 %v75
  %v119 = vpop.f32.mrb[0].mxu0
  %v120 = vadd.f32 %v45, %v119
  %v121 = vpop.f32.mrb[0].mxu0
  %v122 = vpop.f32.mrb[0].mxu0
  %v123 = vadd.f32 %v45, %v122
  %v124 = vpop.f32.mrb[0].mxu0
  %125 = vdwg.mxu0
  %v126 = vmul.f32 %v112, %v112
  %v127 = vmul.f32 %v115, %v115
  %v128 = vmul.f32 %v120, %v120
  %v129 = vmul.f32 %v123, %v123
  %v130 = vmul.f32 %v112, %v126
  %v131 = vmul.f32 %v115, %v127
  %v132 = vmul.f32 %v120, %v128
  %v133 = vmul.f32 %v123, %v129
  %v134 = vmul.f32 %v130, 0.044715
  %v135 = vmul.f32 %v131, 0.044715
  %v136 = vmul.f32 %v132, 0.044715
  %v137 = vmul.f32 %v133, 0.044715
  %v138 = vadd.f32 %v112, %v134
  %v139 = vadd.f32 %v115, %v135
  %v140 = vadd.f32 %v120, %v136
  %v141 = vadd.f32 %v123, %v137
  %v142 = vmul.f32 %v138, 0.7978846
  %v143 = vmul.f32 %v139, 0.7978846
  %v144 = vmul.f32 %v140, 0.7978846
  %v145 = vmul.f32 %v141, 0.7978846
  %v146 = vtanh.pop %v142
  %v147 = vtanh.pop %v143
  %v148 = vtanh.pop %v144
  %v149 = vtanh.pop %v145
  %v150 = vadd.f32 %v146, 1.0
  %v151 = vadd.f32 %v147, 1.0
  %v152 = vadd.f32 %v148, 1.0
  %v153 = vadd.f32 %v149, 1.0
  %v154 = vmul.f32 %v150, 0.5
  %v155 = vmul.f32 %v151, 0.5
  %v156 = vmul.f32 %v152, 0.5
  %v157 = vmul.f32 %v153, 0.5
  %v158 = vmul.f32 %v112, %v154
  %v159 = vmul.f32 %v115, %v155
  %v160 = vmul.f32 %v120, %v156
  %v161 = vmul.f32 %v123, %v157
  %v162 = vld [vmem:[%s2 + $0x40] sm:$0xf]
  %v163 = vld [vmem:[%s2 + $0x44] sm:$0xf]
  %v164 = vld [vmem:[%s2 + $0x48] sm:$0xf]
  %v165 = vld [vmem:[%s2 + $0x4c] sm:$0xf]
  %v166 = vpack.c.bf16 %v159, %v158
  %v167 = vpack.c.bf16 %v161, %v160
  %v168 = vld [vmem:[%s4 + $0x1] sm:$0x1]
  %v169 = vlaneseq
  %v170 = vshrl.u32 %v169, 7
  %v171 = vsub.s32 0, %v170
  %v172 = vrot.slane %v168, %v171
  %v177 = vunpack.c.l.b16 %v162
  %v178 = vunpack.c.l.b16 %v163
  %v179 = vunpack.c.l.b16 %v164
  %v180 = vunpack.c.l.b16 %v165
  %v181 = vpack.c.b16 %v178, %v177
  %v182 = vpack.c.b16 %v180, %v179
  %vm185 = vcmask 261120
  %v187 = vsel %vm185, %v166, 0
  %v190 = vsel %vm185, %v167, 0
  %192 = vmatprep.subr.bf16.mxu0 0
  %193 = vmatpush1.bf16.msra.mxu0 %v181
  %194 = vmatprep.subr.bf16.mxu0 0
  %195 = vmatpush1.bf16.msra.mxu0 %v182
  %196 = vmatprep.subr.bf16.mxu0 0
  %197 = vmatpush1.bf16.msra.mxu0 0
  %198 = vmatprep.subr.bf16.mxu0 0
  %199 = vmatpush1.bf16.msra.mxu0 0
  %200 = vmatprep.subr.bf16.mxu0 0
  %201 = vmatpush1.bf16.msra.mxu0 0
  %202 = vmatprep.subr.bf16.mxu0 0
  %203 = vmatpush1.bf16.msra.mxu0 0
  %204 = vmatprep.subr.bf16.mxu0 0
  %205 = vmatpush1.bf16.msra.mxu0 0
  %206 = vmatprep.subr.bf16.mxu0 0
  %207 = vmatpush1.bf16.msra.mxu0 0
  %208 = vmatprep.subr.bf16.mxu0 0
  %209 = vmatpush1.bf16.msra.mxu0 0
  %210 = vmatprep.subr.bf16.mxu0 0
  %211 = vmatpush1.bf16.msra.mxu0 0
  %212 = vmatprep.subr.bf16.mxu0 0
  %213 = vmatpush1.bf16.msra.mxu0 0
  %214 = vmatprep.subr.bf16.mxu0 0
  %215 = vmatpush1.bf16.msra.mxu0 0
  %216 = vmatprep.subr.bf16.mxu0 0
  %217 = vmatpush1.bf16.msra.mxu0 0
  %218 = vmatprep.subr.bf16.mxu0 0
  %219 = vmatpush1.bf16.msra.mxu0 0
  %220 = vmatprep.subr.bf16.mxu0 0
  %221 = vmatpush1.bf16.msra.mxu0 0
  %222 = vmatprep.subr.bf16.mxu0 0
  %223 = vmatpush1.bf16.msra.mxu0 0
  %224 = vmatprep.mubr.bf16.mxu0 0
  %225 = vmatmul.mubr.bf16.gmra.mrb[0].mxu0 %v187
  %v226 = vpop.f32.mrb[0].mxu0
  %v227 = vadd.f32 %v172, %v226
  %v228 = vpop.f32.mrb[0].mxu0
  %v229 = vpop.f32.mrb[0].mxu0
  %v230 = vadd.f32 %v172, %v229
  %v231 = vpop.f32.mrb[0].mxu0
  %232 = vmatprep.mubr.bf16.mxu0 0
  %233 = vmatmul.mubr.bf16.gmra.mrb[0].mxu0 %v190
  %v234 = vpop.f32.mrb[0].mxu0
  %v235 = vadd.f32 %v172, %v234
  %v236 = vpop.f32.mrb[0].mxu0
  %v237 = vpop.f32.mrb[0].mxu0
  %v238 = vadd.f32 %v172, %v237
  %v239 = vpop.f32.mrb[0].mxu0
  %240 = vdwg.mxu0
  %v241 = vld [vmem:[%s5 + $0x20] sm:$0x1]
  %v242 = vlaneseq
  %v243 = vshrl.u32 %v242, 7
  %v244 = vsub.s32 0, %v243
  %v245 = vrot.slane %v241, %v244
  %v246 = vadd.f32 %v227, %v245
  %v247 = vadd.f32 %v230, %v245
  %v248 = vadd.f32 %v235, %v245
  %v249 = vadd.f32 %v238, %v245
  %v250 = vld [vmem:[%s5] sm:$0xff]
  %v251 = vld [vmem:[%s5 + $0x8] sm:$0xff]
  %v252 = vld [vmem:[%s5 + $0x10] sm:$0xff]
  %v253 = vld [vmem:[%s5 + $0x18] sm:$0xff]
  %v254 = vadd.f32 %v246, %v250
  %v255 = vadd.f32 %v247, %v251
  %v256 = vadd.f32 %v248, %v252
  %v257 = vadd.f32 %v249, %v253
  %v258 = vld [vmem:[%s1] sm:$0x3f]
  %v259 = vld [vmem:[%s2 + $0x50] sm:$0xf]
  %v260 = vld [vmem:[%s2 + $0x54] sm:$0xf]
  %v261 = vld [vmem:[%s2 + $0x58] sm:$0xf]
  %v262 = vld [vmem:[%s2 + $0x5c] sm:$0xf]
  %v263 = vpack.c.bf16 %v258, %v258
  %v264 = vld [vmem:[%s4 + $0x2] sm:$0x1]
  %v265 = vlaneseq
  %v266 = vshrl.u32 %v265, 7
  %v267 = vsub.s32 0, %v266
  %v268 = vrot.slane %v264, %v267
  %v273 = vunpack.c.l.b16 %v259
  %v274 = vunpack.c.l.b16 %v260
  %v275 = vunpack.c.l.b16 %v261
  %v276 = vunpack.c.l.b16 %v262
  %v277 = vpack.c.b16 %v274, %v273
  %v278 = vpack.c.b16 %v276, %v275
  %v282 = vsel %vm185, %v263, 0
  %284 = vmatprep.subr.bf16.mxu0 0
  %285 = vmatpush1.bf16.msra.mxu0 %v277
  %286 = vmatprep.subr.bf16.mxu0 0
  %287 = vmatpush1.bf16.msra.mxu0 %v278
  %288 = vmatprep.subr.bf16.mxu0 0
  %289 = vmatpush1.bf16.msra.mxu0 0
  %290 = vmatprep.subr.bf16.mxu0 0
  %291 = vmatpush1.bf16.msra.mxu0 0
  %292 = vmatprep.subr.bf16.mxu0 0
  %293 = vmatpush1.bf16.msra.mxu0 0
  %294 = vmatprep.subr.bf16.mxu0 0
  %295 = vmatpush1.bf16.msra.mxu0 0
  %296 = vmatprep.subr.bf16.mxu0 0
  %297 = vmatpush1.bf16.msra.mxu0 0
  %298 = vmatprep.subr.bf16.mxu0 0
  %299 = vmatpush1.bf16.msra.mxu0 0
  %300 = vmatprep.subr.bf16.mxu0 0
  %301 = vmatpush1.bf16.msra.mxu0 0
  %302 = vmatprep.subr.bf16.mxu0 0
  %303 = vmatpush1.bf16.msra.mxu0 0
  %304 = vmatprep.subr.bf16.mxu0 0
  %305 = vmatpush1.bf16.msra.mxu0 0
  %306 = vmatprep.subr.bf16.mxu0 0
  %307 = vmatpush1.bf16.msra.mxu0 0
  %308 = vmatprep.subr.bf16.mxu0 0
  %309 = vmatpush1.bf16.msra.mxu0 0
  %310 = vmatprep.subr.bf16.mxu0 0
  %311 = vmatpush1.bf16.msra.mxu0 0
  %312 = vmatprep.subr.bf16.mxu0 0
  %313 = vmatpush1.bf16.msra.mxu0 0
  %314 = vmatprep.subr.bf16.mxu0 0
  %315 = vmatpush1.bf16.msra.mxu0 0
  %316 = vmatprep.mubr.bf16.mxu0 0
  %317 = vmatmul.mubr.bf16.gmra.mrb[0].mxu0 %v282
  %v318 = vpop.f32.mrb[0].mxu0
  %v319 = vadd.f32 %v268, %v318
  %v320 = vpop.f32.mrb[0].mxu0
  %v321 = vpop.f32.mrb[0].mxu0
  %v322 = vpop.f32.mrb[0].mxu0
  %323 = vdwg.mxu0
  %v324 = vld [vmem:[%s3] sm:$0xf]
  %v325 = vld [vmem:[%s3 + $0x4] sm:$0xf]
  %v326 = vld [vmem:[%s3 + $0x8] sm:$0xf]
  %v327 = vld [vmem:[%s3 + $0xc] sm:$0xf]
  %v328 = vpack.c.bf16 %v255, %v254
  %v329 = vpack.c.bf16 %v257, %v256
  %v330 = vld [vmem:[%s4 + $0x3] sm:$0x1]
  %v331 = vlaneseq
  %v332 = vshrl.u32 %v331, 7
  %v333 = vsub.s32 0, %v332
  %v334 = vrot.slane %v330, %v333
  %v339 = vunpack.c.l.b16 %v324
  %v340 = vunpack.c.l.b16 %v325
  %v341 = vunpack.c.l.b16 %v326
  %v342 = vunpack.c.l.b16 %v327
  %v343 = vpack.c.b16 %v340, %v339
  %v344 = vpack.c.b16 %v342, %v341
  %v348 = vsel %vm185, %v328, 0
  %v351 = vsel %vm185, %v329, 0
  %353 = vmatprep.subr.bf16.mxu0 0
  %354 = vmatpush1.bf16.msra.mxu0 %v343
  %355 = vmatprep.subr.bf16.mxu0 0
  %356 = vmatpush1.bf16.msra.mxu0 %v344
  %357 = vmatprep.subr.bf16.mxu0 0
  %358 = vmatpush1.bf16.msra.mxu0 0
  %359 = vmatprep.subr.bf16.mxu0 0
  %360 = vmatpush1.bf16.msra.mxu0 0
  %361 = vmatprep.subr.bf16.mxu0 0
  %362 = vmatpush1.bf16.msra.mxu0 0
  %363 = vmatprep.subr.bf16.mxu0 0
  %364 = vmatpush1.bf16.msra.mxu0 0
  %365 = vmatprep.subr.bf16.mxu0 0
  %366 = vmatpush1.bf16.msra.mxu0 0
  %367 = vmatprep.subr.bf16.mxu0 0
  %368 = vmatpush1.bf16.msra.mxu0 0
  %369 = vmatprep.subr.bf16.mxu0 0
  %370 = vmatpush1.bf16.msra.mxu0 0
  %371 = vmatprep.subr.bf16.mxu0 0
  %372 = vmatpush1.bf16.msra.mxu0 0
  %373 = vmatprep.subr.bf16.mxu0 0
  %374 = vmatpush1.bf16.msra.mxu0 0
  %375 = vmatprep.subr.bf16.mxu0 0
  %376 = vmatpush1.bf16.msra.mxu0 0
  %377 = vmatprep.subr.bf16.mxu0 0
  %378 = vmatpush1.bf16.msra.mxu0 0
  %379 = vmatprep.subr.bf16.mxu0 0
  %380 = vmatpush1.bf16.msra.mxu0 0
  %381 = vmatprep.subr.bf16.mxu0 0
  %382 = vmatpush1.bf16.msra.mxu0 0
  %383 = vmatprep.subr.bf16.mxu0 0
  %384 = vmatpush1.bf16.msra.mxu0 0
  %385 = vmatprep.mubr.bf16.mxu0 0
  %386 = vmatmul.mubr.bf16.gmra.mrb[0].mxu0 %v348
  %v387 = vpop.f32.mrb[0].mxu0
  %v388 = vadd.f32 %v334, %v387
  %v389 = vpop.f32.mrb[0].mxu0
  %v390 = vpop.f32.mrb[0].mxu0
  %v391 = vadd.f32 %v334, %v390
  %v392 = vpop.f32.mrb[0].mxu0
  %393 = vmatprep.mubr.bf16.mxu0 0
  %394 = vmatmul.mubr.bf16.gmra.mrb[0].mxu0 %v351
  %v395 = vpop.f32.mrb[0].mxu0
  %v396 = vadd.f32 %v334, %v395
  %v397 = vpop.f32.mrb[0].mxu0
  %v398 = vpop.f32.mrb[0].mxu0
  %v399 = vadd.f32 %v334, %v398
  %v400 = vpop.f32.mrb[0].mxu0
  %401 = vdwg.mxu0
  %v402 = vld [vmem:[%s2 + $0x60] sm:$0xf]
  %v403 = vld [vmem:[%s2 + $0x64] sm:$0xf]
  %v404 = vld [vmem:[%s2 + $0x68] sm:$0xf]
  %v405 = vld [vmem:[%s2 + $0x6c] sm:$0xf]
  %v406 = vpack.c.bf16 %v247, %v246
  %v407 = vpack.c.bf16 %v249, %v248
  %v408 = vld [vmem:[%s4 + $0x4] sm:$0x1]
  %v409 = vlaneseq
  %v410 = vshrl.u32 %v409, 7
  %v411 = vsub.s32 0, %v410
  %v412 = vrot.slane %v408, %v411
  %v417 = vunpack.c.l.b16 %v402
  %v418 = vunpack.c.l.b16 %v403
  %v419 = vunpack.c.l.b16 %v404
  %v420 = vunpack.c.l.b16 %v405
  %v421 = vpack.c.b16 %v418, %v417
  %v422 = vpack.c.b16 %v420, %v419
  %v426 = vsel %vm185, %v406, 0
  %v429 = vsel %vm185, %v407, 0
  %431 = vmatprep.subr.bf16.mxu0 0
  %432 = vmatpush1.bf16.msra.mxu0 %v421
  %433 = vmatprep.subr.bf16.mxu0 0
  %434 = vmatpush1.bf16.msra.mxu0 %v422
  %435 = vmatprep.subr.bf16.mxu0 0
  %436 = vmatpush1.bf16.msra.mxu0 0
  %437 = vmatprep.subr.bf16.mxu0 0
  %438 = vmatpush1.bf16.msra.mxu0 0
  %439 = vmatprep.subr.bf16.mxu0 0
  %440 = vmatpush1.bf16.msra.mxu0 0
  %441 = vmatprep.subr.bf16.mxu0 0
  %442 = vmatpush1.bf16.msra.mxu0 0
  %443 = vmatprep.subr.bf16.mxu0 0
  %444 = vmatpush1.bf16.msra.mxu0 0
  %445 = vmatprep.subr.bf16.mxu0 0
  %446 = vmatpush1.bf16.msra.mxu0 0
  %447 = vmatprep.subr.bf16.mxu0 0
  %448 = vmatpush1.bf16.msra.mxu0 0
  %449 = vmatprep.subr.bf16.mxu0 0
  %450 = vmatpush1.bf16.msra.mxu0 0
  %451 = vmatprep.subr.bf16.mxu0 0
  %452 = vmatpush1.bf16.msra.mxu0 0
  %453 = vmatprep.subr.bf16.mxu0 0
  %454 = vmatpush1.bf16.msra.mxu0 0
  %455 = vmatprep.subr.bf16.mxu0 0
  %456 = vmatpush1.bf16.msra.mxu0 0
  %457 = vmatprep.subr.bf16.mxu0 0
  %458 = vmatpush1.bf16.msra.mxu0 0
  %459 = vmatprep.subr.bf16.mxu0 0
  %460 = vmatpush1.bf16.msra.mxu0 0
  %461 = vmatprep.subr.bf16.mxu0 0
  %462 = vmatpush1.bf16.msra.mxu0 0
  %463 = vmatprep.mubr.bf16.mxu0 0
  %464 = vmatmul.mubr.bf16.gmra.mrb[0].mxu0 %v426
  %v465 = vpop.f32.mrb[0].mxu0
  %v466 = vadd.f32 %v412, %v465
  %v467 = vpop.f32.mrb[0].mxu0
  %v468 = vpop.f32.mrb[0].mxu0
  %v469 = vadd.f32 %v412, %v468
  %v470 = vpop.f32.mrb[0].mxu0
  %471 = vmatprep.mubr.bf16.mxu0 0
  %472 = vmatmul.mubr.bf16.gmra.mrb[0].mxu0 %v429
  %v473 = vpop.f32.mrb[0].mxu0
  %v474 = vadd.f32 %v412, %v473
  %v475 = vpop.f32.mrb[0].mxu0
  %v476 = vpop.f32.mrb[0].mxu0
  %v477 = vadd.f32 %v412, %v476
  %v478 = vpop.f32.mrb[0].mxu0
  %479 = vdwg.mxu0
  %v480 = vpack.c.bf16 %v319, %v319
  %v481 = vpack.c.bf16 %v391, %v388
  %v482 = vpack.c.bf16 %v399, %v396
  %v484 = vsel %vm185, %v480, 0
  %v487 = vsel %vm185, %v481, 0
  %v490 = vsel %vm185, %v482, 0
  %492 = vmatprep.subr.bf16.mxu0 0
  %493 = vmatpush1.bf16.xpose.msra.mxu0 %v487
  %494 = vmatprep.subr.bf16.mxu0 0
  %495 = vmatpush1.bf16.xpose.msra.mxu0 %v490
  %496 = vmatprep.subr.bf16.mxu0 0
  %497 = vmatpush1.bf16.xpose.msra.mxu0 0
  %498 = vmatprep.subr.bf16.mxu0 0
  %499 = vmatpush1.bf16.xpose.msra.mxu0 0
  %500 = vmatprep.subr.bf16.mxu0 0
  %501 = vmatpush1.bf16.xpose.msra.mxu0 0
  %502 = vmatprep.subr.bf16.mxu0 0
  %503 = vmatpush1.bf16.xpose.msra.mxu0 0
  %504 = vmatprep.subr.bf16.mxu0 0
  %505 = vmatpush1.bf16.xpose.msra.mxu0 0
  %506 = vmatprep.subr.bf16.mxu0 0
  %507 = vmatpush1.bf16.xpose.msra.mxu0 0
  %508 = vmatprep.subr.bf16.mxu0 0
  %509 = vmatpush1.bf16.xpose.msra.mxu0 0
  %510 = vmatprep.subr.bf16.mxu0 0
  %511 = vmatpush1.bf16.xpose.msra.mxu0 0
  %512 = vmatprep.subr.bf16.mxu0 0
  %513 = vmatpush1.bf16.xpose.msra.mxu0 0
  %514 = vmatprep.subr.bf16.mxu0 0
  %515 = vmatpush1.bf16.xpose.msra.mxu0 0
  %516 = vmatprep.subr.bf16.mxu0 0
  %517 = vmatpush1.bf16.xpose.msra.mxu0 0
  %518 = vmatprep.subr.bf16.mxu0 0
  %519 = vmatpush1.bf16.xpose.msra.mxu0 0
  %520 = vmatprep.subr.bf16.mxu0 0
  %521 = vmatpush1.bf16.xpose.msra.mxu0 0
  %522 = vmatprep.subr.bf16.mxu0 0
  %523 = vmatpush1.bf16.xpose.msra.mxu0 0
  %524 = vmatprep.mubr.bf16.mxu0 0
  %525 = vmatmul.mubr.bf16.gmra.mrb[0].mxu0 %v484
  %v526 = vpop.f32.mrb[0].mxu0
  %v527 = vadd.f32 0.0, %v526
  %v528 = vpop.f32.mrb[0].mxu0
  %v529 = vpop.f32.mrb[0].mxu0
  %v530 = vpop.f32.mrb[0].mxu0
  %531 = vdwg.mxu0
  %v532 = vmul.f32 %v527, 0.17677669
  %v533 = vld [vmem:[%s5 + $0x28] sm:$0x3f]
  %v534 = vadd.f32 %v532, %v533
  %v535 = vmul.f32 %v534, 1.442695
  %v536 = vpow.pop %v535
  %vm537 = vcmask 259072
  %v538 = vsel %vm537, %v536, 0.0
  %539 = vadd.xlane.f32.xlu0 %v538
  %v540 = vpop.xlane.xlu0 %539
  %v541 = vrcp.pop %v540
  %v542 = vmul.f32 %v536, %v541
  %v543 = vpack.c.bf16 %v542, %v542
  %v544 = vpack.c.bf16 %v469, %v466
  %v545 = vpack.c.bf16 %v477, %v474
  %v547 = vsel %vm185, %v543, 0
  %549 = vmatprep.subr.bf16.mxu0 0
  %550 = vmatpush1.bf16.msra.mxu0 %v544
  %551 = vmatprep.subr.bf16.mxu0 0
  %552 = vmatpush1.bf16.msra.mxu0 %v545
  %553 = vmatprep.subr.bf16.mxu0 0
  %554 = vmatpush1.bf16.msra.mxu0 0
  %555 = vmatprep.subr.bf16.mxu0 0
  %556 = vmatpush1.bf16.msra.mxu0 0
  %557 = vmatprep.subr.bf16.mxu0 0
  %558 = vmatpush1.bf16.msra.mxu0 0
  %559 = vmatprep.subr.bf16.mxu0 0
  %560 = vmatpush1.bf16.msra.mxu0 0
  %561 = vmatprep.subr.bf16.mxu0 0
  %562 = vmatpush1.bf16.msra.mxu0 0
  %563 = vmatprep.subr.bf16.mxu0 0
  %564 = vmatpush1.bf16.msra.mxu0 0
  %565 = vmatprep.subr.bf16.mxu0 0
  %566 = vmatpush1.bf16.msra.mxu0 0
  %567 = vmatprep.subr.bf16.mxu0 0
  %568 = vmatpush1.bf16.msra.mxu0 0
  %569 = vmatprep.subr.bf16.mxu0 0
  %570 = vmatpush1.bf16.msra.mxu0 0
  %571 = vmatprep.subr.bf16.mxu0 0
  %572 = vmatpush1.bf16.msra.mxu0 0
  %573 = vmatprep.subr.bf16.mxu0 0
  %574 = vmatpush1.bf16.msra.mxu0 0
  %575 = vmatprep.subr.bf16.mxu0 0
  %576 = vmatpush1.bf16.msra.mxu0 0
  %577 = vmatprep.subr.bf16.mxu0 0
  %578 = vmatpush1.bf16.msra.mxu0 0
  %579 = vmatprep.subr.bf16.mxu0 0
  %580 = vmatpush1.bf16.msra.mxu0 0
  %581 = vmatprep.mubr.bf16.mxu0 0
  %582 = vmatmul.mubr.bf16.gmra.mrb[0].mxu0 %v547
  %v583 = vpop.f32.mrb[0].mxu0
  %v584 = vadd.f32 0.0, %v583
  %v585 = vpop.f32.mrb[0].mxu0
  %v586 = vpop.f32.mrb[0].mxu0
  %v587 = vpop.f32.mrb[0].mxu0
  %588 = vdwg.mxu0
  %v589 = vld [vmem:[%s2 + $0x70] sm:$0xf]
  %v590 = vld [vmem:[%s2 + $0x74] sm:$0xf]
  %v591 = vld [vmem:[%s2 + $0x78] sm:$0xf]
  %v592 = vld [vmem:[%s2 + $0x7c] sm:$0xf]
  %v593 = vpack.c.bf16 %v584, %v584
  %v598 = vunpack.c.l.b16 %v589
  %v599 = vunpack.c.l.b16 %v590
  %v600 = vunpack.c.l.b16 %v591
  %v601 = vunpack.c.l.b16 %v592
  %v602 = vpack.c.b16 %v599, %v598
  %v603 = vpack.c.b16 %v601, %v600
  %v607 = vsel %vm185, %v593, 0
  %609 = vmatprep.subr.bf16.mxu0 0
  %610 = vmatpush1.bf16.msra.mxu0 %v602
  %611 = vmatprep.subr.bf16.mxu0 0
  %612 = vmatpush1.bf16.msra.mxu0 %v603
  %613 = vmatprep.subr.bf16.mxu0 0
  %614 = vmatpush1.bf16.msra.mxu0 0
  %615 = vmatprep.subr.bf16.mxu0 0
  %616 = vmatpush1.bf16.msra.mxu0 0
  %617 = vmatprep.subr.bf16.mxu0 0
  %618 = vmatpush1.bf16.msra.mxu0 0
  %619 = vmatprep.subr.bf16.mxu0 0
  %620 = vmatpush1.bf16.msra.mxu0 0
  %621 = vmatprep.subr.bf16.mxu0 0
  %622 = vmatpush1.bf16.msra.mxu0 0
  %623 = vmatprep.subr.bf16.mxu0 0
  %624 = vmatpush1.bf16.msra.mxu0 0
  %625 = vmatprep.subr.bf16.mxu0 0
  %626 = vmatpush1.bf16.msra.mxu0 0
  %627 = vmatprep.subr.bf16.mxu0 0
  %628 = vmatpush1.bf16.msra.mxu0 0
  %629 = vmatprep.subr.bf16.mxu0 0
  %630 = vmatpush1.bf16.msra.mxu0 0
  %631 = vmatprep.subr.bf16.mxu0 0
  %632 = vmatpush1.bf16.msra.mxu0 0
  %633 = vmatprep.subr.bf16.mxu0 0
  %634 = vmatpush1.bf16.msra.mxu0 0
  %635 = vmatprep.subr.bf16.mxu0 0
  %636 = vmatpush1.bf16.msra.mxu0 0
  %637 = vmatprep.subr.bf16.mxu0 0
  %638 = vmatpush1.bf16.msra.mxu0 0
  %639 = vmatprep.subr.bf16.mxu0 0
  %640 = vmatpush1.bf16.msra.mxu0 0
  %641 = vmatprep.mubr.bf16.mxu0 0
  %642 = vmatmul.mubr.bf16.gmra.mrb[0].mxu0 %v607
  %v643 = vpop.f32.mrb[0].mxu0
  %v644 = vadd.f32 0.0, %v643
  %v645 = vpop.f32.mrb[0].mxu0
  %v646 = vpop.f32.mrb[0].mxu0
  %v647 = vpop.f32.mrb[0].mxu0
  %648 = vdwg.mxu0
  %v649 = vadd.f32 %v258, %v644
  %v650 = vld [vmem:[%s4 + $0x5] sm:$0x1]
  %v651 = vlaneseq
  %v652 = vshrl.u32 %v651, 7
  %v653 = vsub.s32 0, %v652
  %v654 = vrot.slane %v650, %v653
  %v655 = vadd.f32 %v649, %v654
  %v656 = vld [vmem:[%s3 + $0x20] sm:$0xf]
  %v657 = vld [vmem:[%s3 + $0x24] sm:$0xf]
  %v658 = vld [vmem:[%s3 + $0x28] sm:$0xf]
  %v659 = vld [vmem:[%s3 + $0x2c] sm:$0xf]
  %v660 = vpack.c.bf16 %v655, %v655
  %v661 = vld [vmem:[%s4 + $0x6] sm:$0x1]
  %v662 = vlaneseq
  %v663 = vshrl.u32 %v662, 7
  %v664 = vsub.s32 0, %v663
  %v665 = vrot.slane %v661, %v664
  %v670 = vunpack.c.l.b16 %v656
  %v671 = vunpack.c.l.b16 %v657
  %v672 = vunpack.c.l.b16 %v658
  %v673 = vunpack.c.l.b16 %v659
  %v674 = vpack.c.b16 %v671, %v670
  %v675 = vpack.c.b16 %v673, %v672
  %v679 = vsel %vm185, %v660, 0
  %681 = vmatprep.subr.bf16.mxu0 0
  %682 = vmatpush1.bf16.msra.mxu0 %v674
  %683 = vmatprep.subr.bf16.mxu0 0
  %684 = vmatpush1.bf16.msra.mxu0 %v675
  %685 = vmatprep.subr.bf16.mxu0 0
  %686 = vmatpush1.bf16.msra.mxu0 0
  %687 = vmatprep.subr.bf16.mxu0 0
  %688 = vmatpush1.bf16.msra.mxu0 0
  %689 = vmatprep.subr.bf16.mxu0 0
  %690 = vmatpush1.bf16.msra.mxu0 0
  %691 = vmatprep.subr.bf16.mxu0 0
  %692 = vmatpush1.bf16.msra.mxu0 0
  %693 = vmatprep.subr.bf16.mxu0 0
  %694 = vmatpush1.bf16.msra.mxu0 0
  %695 = vmatprep.subr.bf16.mxu0 0
  %696 = vmatpush1.bf16.msra.mxu0 0
  %697 = vmatprep.subr.bf16.mxu0 0
  %698 = vmatpush1.bf16.msra.mxu0 0
  %699 = vmatprep.subr.bf16.mxu0 0
  %700 = vmatpush1.bf16.msra.mxu0 0
  %701 = vmatprep.subr.bf16.mxu0 0
  %702 = vmatpush1.bf16.msra.mxu0 0
  %703 = vmatprep.subr.bf16.mxu0 0
  %704 = vmatpush1.bf16.msra.mxu0 0
  %705 = vmatprep.subr.bf16.mxu0 0
  %706 = vmatpush1.bf16.msra.mxu0 0
  %707 = vmatprep.subr.bf16.mxu0 0
  %708 = vmatpush1.bf16.msra.mxu0 0
  %709 = vmatprep.subr.bf16.mxu0 0
  %710 = vmatpush1.bf16.msra.mxu0 0
  %711 = vmatprep.subr.bf16.mxu0 0
  %712 = vmatpush1.bf16.msra.mxu0 0
  %713 = vmatprep.mubr.bf16.mxu0 0
  %714 = vmatmul.mubr.bf16.gmra.mrb[0].mxu0 %v679
  %v715 = vpop.f32.mrb[0].mxu0
  %v716 = vadd.f32 %v665, %v715
  %v717 = vpop.f32.mrb[0].mxu0
  %v718 = vpop.f32.mrb[0].mxu0
  %v719 = vpop.f32.mrb[0].mxu0
  %720 = vdwg.mxu0
  %v721 = vmul.f32 %v716, %v716
  %v722 = vmul.f32 %v716, %v721
  %v723 = vmul.f32 %v722, 0.044715
  %v724 = vadd.f32 %v716, %v723
  %v725 = vmul.f32 %v724, 0.7978846
  %v726 = vtanh.pop %v725
  %v727 = vadd.f32 %v726, 1.0
  %v728 = vmul.f32 %v727, 0.5
  %v729 = vmul.f32 %v716, %v728
  %v730 = vld [vmem:[%s2 + $0x20] sm:$0xf]
  %v731 = vld [vmem:[%s2 + $0x24] sm:$0xf]
  %v732 = vld [vmem:[%s2 + $0x28] sm:$0xf]
  %v733 = vld [vmem:[%s2 + $0x2c] sm:$0xf]
  %v734 = vld [vmem:[%s2 + $0x30] sm:$0xf]
  %v735 = vld [vmem:[%s2 + $0x34] sm:$0xf]
  %v736 = vld [vmem:[%s2 + $0x38] sm:$0xf]
  %v737 = vld [vmem:[%s2 + $0x3c] sm:$0xf]
  %v738 = vpack.c.bf16 %v729, %v729
  %v747 = vunpack.c.l.b16 %v730
  %v748 = vunpack.c.l.b16 %v731
  %v749 = vunpack.c.l.b16 %v732
  %v750 = vunpack.c.l.b16 %v733
  %v751 = vunpack.c.l.b16 %v734
  %v752 = vunpack.c.l.b16 %v735
  %v753 = vunpack.c.l.b16 %v736
  %v754 = vunpack.c.l.b16 %v737
  %v755 = vpack.c.b16 %v748, %v747
  %v756 = vpack.c.b16 %v750, %v749
  %v757 = vpack.c.b16 %v752, %v751
  %v758 = vpack.c.b16 %v754, %v753
  %v764 = vsel %vm70, %v738, 0
  %766 = vmatprep.subr.bf16.mxu0 0
  %767 = vmatpush1.bf16.msra.mxu0 %v755
  %768 = vmatprep.subr.bf16.mxu0 0
  %769 = vmatpush1.bf16.msra.mxu0 %v756
  %770 = vmatprep.subr.bf16.mxu0 0
  %771 = vmatpush1.bf16.msra.mxu0 %v757
  %772 = vmatprep.subr.bf16.mxu0 0
  %773 = vmatpush1.bf16.msra.mxu0 %v758
  %774 = vmatprep.subr.bf16.mxu0 0
  %775 = vmatpush1.bf16.msra.mxu0 0
  %776 = vmatprep.subr.bf16.mxu0 0
  %777 = vmatpush1.bf16.msra.mxu0 0
  %778 = vmatprep.subr.bf16.mxu0 0
  %779 = vmatpush1.bf16.msra.mxu0 0
  %780 = vmatprep.subr.bf16.mxu0 0
  %781 = vmatpush1.bf16.msra.mxu0 0
  %782 = vmatprep.subr.bf16.mxu0 0
  %783 = vmatpush1.bf16.msra.mxu0 0
  %784 = vmatprep.subr.bf16.mxu0 0
  %785 = vmatpush1.bf16.msra.mxu0 0
  %786 = vmatprep.subr.bf16.mxu0 0
  %787 = vmatpush1.bf16.msra.mxu0 0
  %788 = vmatprep.subr.bf16.mxu0 0
  %789 = vmatpush1.bf16.msra.mxu0 0
  %790 = vmatprep.subr.bf16.mxu0 0
  %791 = vmatpush1.bf16.msra.mxu0 0
  %792 = vmatprep.subr.bf16.mxu0 0
  %793 = vmatpush1.bf16.msra.mxu0 0
  %794 = vmatprep.subr.bf16.mxu0 0
  %795 = vmatpush1.bf16.msra.mxu0 0
  %796 = vmatprep.subr.bf16.mxu0 0
  %797 = vmatpush1.bf16.msra.mxu0 0
  %798 = vmatprep.mubr.bf16.mxu0 0
  %799 = vmatmul.mubr.bf16.gmra.mrb[0].mxu0 %v764
  %v800 = vpop.f32.mrb[0].mxu0
  %v801 = vadd.f32 0.0, %v800
  %v802 = vpop.f32.mrb[0].mxu0
  %v803 = vpop.f32.mrb[0].mxu0
  %v804 = vpop.f32.mrb[0].mxu0
  %805 = vdwg.mxu0
  %v806 = vadd.f32 %v655, %v801
  %v807 = vld [vmem:[%s4 + $0x7] sm:$0x1]
  %v808 = vlaneseq
  %v809 = vshrl.u32 %v808, 7
  %v810 = vsub.s32 0, %v809
  %v811 = vrot.slane %v807, %v810
  %v812 = vadd.f32 %v806, %v811
  %v813 = vld [vmem:[%s3 + $0x10] sm:$0xf]
  %v814 = vld [vmem:[%s3 + $0x14] sm:$0xf]
  %v815 = vld [vmem:[%s3 + $0x18] sm:$0xf]
  %v816 = vld [vmem:[%s3 + $0x1c] sm:$0xf]
  %v817 = vpack.c.bf16 %v812, %v812
  %v818 = vld [vmem:[%s4 + $0x8] sm:$0x1]
  %v819 = vlaneseq
  %v820 = vshrl.u32 %v819, 7
  %v821 = vsub.s32 0, %v820
  %v822 = vrot.slane %v818, %v821
  %v827 = vunpack.c.l.b16 %v813
  %v828 = vunpack.c.l.b16 %v814
  %v829 = vunpack.c.l.b16 %v815
  %v830 = vunpack.c.l.b16 %v816
  %v831 = vpack.c.b16 %v828, %v827
  %v832 = vpack.c.b16 %v830, %v829
  %v836 = vsel %vm185, %v817, 0
  %838 = vmatprep.subr.bf16.mxu0 0
  %839 = vmatpush1.bf16.msra.mxu0 %v831
  %840 = vmatprep.subr.bf16.mxu0 0
  %841 = vmatpush1.bf16.msra.mxu0 %v832
  %842 = vmatprep.subr.bf16.mxu0 0
  %843 = vmatpush1.bf16.msra.mxu0 0
  %844 = vmatprep.subr.bf16.mxu0 0
  %845 = vmatpush1.bf16.msra.mxu0 0
  %846 = vmatprep.subr.bf16.mxu0 0
  %847 = vmatpush1.bf16.msra.mxu0 0
  %848 = vmatprep.subr.bf16.mxu0 0
  %849 = vmatpush1.bf16.msra.mxu0 0
  %850 = vmatprep.subr.bf16.mxu0 0
  %851 = vmatpush1.bf16.msra.mxu0 0
  %852 = vmatprep.subr.bf16.mxu0 0
  %853 = vmatpush1.bf16.msra.mxu0 0
  %854 = vmatprep.subr.bf16.mxu0 0
  %855 = vmatpush1.bf16.msra.mxu0 0
  %856 = vmatprep.subr.bf16.mxu0 0
  %857 = vmatpush1.bf16.msra.mxu0 0
  %858 = vmatprep.subr.bf16.mxu0 0
  %859 = vmatpush1.bf16.msra.mxu0 0
  %860 = vmatprep.subr.bf16.mxu0 0
  %861 = vmatpush1.bf16.msra.mxu0 0
  %862 = vmatprep.subr.bf16.mxu0 0
  %863 = vmatpush1.bf16.msra.mxu0 0
  %864 = vmatprep.subr.bf16.mxu0 0
  %865 = vmatpush1.bf16.msra.mxu0 0
  %866 = vmatprep.subr.bf16.mxu0 0
  %867 = vmatpush1.bf16.msra.mxu0 0
  %868 = vmatprep.subr.bf16.mxu0 0
  %869 = vmatpush1.bf16.msra.mxu0 0
  %870 = vmatprep.mubr.bf16.mxu0 0
  %871 = vmatmul.mubr.bf16.gmra.mrb[0].mxu0 %v836
  %v872 = vpop.f32.mrb[0].mxu0
  %v873 = vadd.f32 %v822, %v872
  %v874 = vpop.f32.mrb[0].mxu0
  %v875 = vpop.f32.mrb[0].mxu0
  %v876 = vpop.f32.mrb[0].mxu0
  %877 = vdwg.mxu0
  %v878 = vpack.c.bf16 %v873, %v873
  %881 = vrot.lane.b32.xlu0 %v481, 96
  %v882 = vpop.permute.xlu0 %881
  %883 = vrot.lane.b32.xlu0 %v482, 96
  %v884 = vpop.permute.xlu0 %883
  %v886 = vsel %vm185, %v882, 0
  %v889 = vsel %vm185, %v884, 0
  %v892 = vsel %vm185, %v878, 0
  %894 = vmatprep.subr.bf16.mxu0 0
  %895 = vmatpush1.bf16.xpose.msra.mxu0 %v892
  %896 = vmatprep.subr.bf16.mxu0 0
  %897 = vmatpush1.bf16.xpose.msra.mxu0 0
  %898 = vmatprep.subr.bf16.mxu0 0
  %899 = vmatpush1.bf16.xpose.msra.mxu0 0
  %900 = vmatprep.subr.bf16.mxu0 0
  %901 = vmatpush1.bf16.xpose.msra.mxu0 0
  %902 = vmatprep.subr.bf16.mxu0 0
  %903 = vmatpush1.bf16.xpose.msra.mxu0 0
  %904 = vmatprep.subr.bf16.mxu0 0
  %905 = vmatpush1.bf16.xpose.msra.mxu0 0
  %906 = vmatprep.subr.bf16.mxu0 0
  %907 = vmatpush1.bf16.xpose.msra.mxu0 0
  %908 = vmatprep.subr.bf16.mxu0 0
  %909 = vmatpush1.bf16.xpose.msra.mxu0 0
  %910 = vmatprep.subr.bf16.mxu0 0
  %911 = vmatpush1.bf16.xpose.msra.mxu0 0
  %912 = vmatprep.subr.bf16.mxu0 0
  %913 = vmatpush1.bf16.xpose.msra.mxu0 0
  %914 = vmatprep.subr.bf16.mxu0 0
  %915 = vmatpush1.bf16.xpose.msra.mxu0 0
  %916 = vmatprep.subr.bf16.mxu0 0
  %917 = vmatpush1.bf16.xpose.msra.mxu0 0
  %918 = vmatprep.subr.bf16.mxu0 0
  %919 = vmatpush1.bf16.xpose.msra.mxu0 0
  %920 = vmatprep.subr.bf16.mxu0 0
  %921 = vmatpush1.bf16.xpose.msra.mxu0 0
  %922 = vmatprep.subr.bf16.mxu0 0
  %923 = vmatpush1.bf16.xpose.msra.mxu0 0
  %924 = vmatprep.subr.bf16.mxu0 0
  %925 = vmatpush1.bf16.xpose.msra.mxu0 0
  %926 = vmatprep.mubr.bf16.mxu0 0
  %927 = vmatmul.mubr.bf16.gmra.mrb[0].mxu0 %v886
  %v928 = vpop.f32.mrb[0].mxu0
  %v929 = vadd.f32 0.0, %v928
  %v930 = vpop.f32.mrb[0].mxu0
  %v931 = vpop.f32.mrb[0].mxu0
  %v932 = vadd.f32 0.0, %v931
  %v933 = vpop.f32.mrb[0].mxu0
  %934 = vmatprep.mubr.bf16.mxu0 0
  %935 = vmatmul.mubr.bf16.gmra.mrb[0].mxu0 %v889
  %v936 = vpop.f32.mrb[0].mxu0
  %v937 = vadd.f32 0.0, %v936
  %v938 = vpop.f32.mrb[0].mxu0
  %v939 = vpop.f32.mrb[0].mxu0
  %v940 = vadd.f32 0.0, %v939
  %v941 = vpop.f32.mrb[0].mxu0
  %942 = vdwg.mxu0
  %v943 = vmul.f32 %v929, 0.17677669
  %v944 = vmul.f32 %v932, 0.17677669
  %v945 = vmul.f32 %v937, 0.17677669
  %v946 = vmul.f32 %v940, 0.17677669
  %v947 = vld [vmem:[%s5 + $0x30] sm:$0xff]
  %v948 = vld [vmem:[%s5 + $0x38] sm:$0xff]
  %v949 = vld [vmem:[%s5 + $0x40] sm:$0xff]
  %v950 = vld [vmem:[%s5 + $0x48] sm:$0xff]
  %v951 = vadd.f32 %v943, %v947
  %v952 = vadd.f32 %v944, %v948
  %v953 = vadd.f32 %v945, %v949
  %v954 = vadd.f32 %v946, %v950
  %v955 = vmul.f32 %v951, 1.442695
  %v956 = vpow.pop %v955
  %v957 = vmul.f32 %v952, 1.442695
  %v958 = vpow.pop %v957
  %v959 = vmul.f32 %v953, 1.442695
  %v960 = vpow.pop %v959
  %v961 = vmul.f32 %v954, 1.442695
  %v962 = vpow.pop %v961
  %vm963 = vcmask 48128
  %v964 = vsel %vm963, %v956, 0.0
  %965 = vadd.xlane.f32.xlu0 %v964
  %v966 = vpop.xlane.xlu0 %965
  %v967 = vsel %vm963, %v958, 0.0
  %968 = vadd.xlane.f32.xlu0 %v967
  %v969 = vpop.xlane.xlu0 %968
  %v970 = vsel %vm963, %v960, 0.0
  %971 = vadd.xlane.f32.xlu0 %v970
  %v972 = vpop.xlane.xlu0 %971
  %v973 = vsel %vm963, %v962, 0.0
  %974 = vadd.xlane.f32.xlu0 %v973
  %v975 = vpop.xlane.xlu0 %974
  %v976 = vrcp.pop %v966
  %v977 = vrcp.pop %v969
  %v978 = vrcp.pop %v972
  %v979 = vrcp.pop %v975
  %v980 = vmul.f32 %v956, %v976
  %v981 = vmul.f32 %v958, %v977
  %v982 = vmul.f32 %v960, %v978
  %v983 = vmul.f32 %v962, %v979
  %v984 = vpack.c.bf16 %v981, %v980
  %v985 = vpack.c.bf16 %v983, %v982
  %987 = vrot.lane.b32.xlu0 %v878, 96
  %v988 = vpop.permute.xlu0 %987
  %v990 = vsel %vm963, %v984, 0
  %v993 = vsel %vm963, %v985, 0
  %vm995 = vcmask 1042432
  %v997 = vsel %vm995, %v988, 0
  %999 = vmatprep.subr.bf16.mxu0 0
  %1000 = vmatpush1.bf16.msra.mxu0 %v997
  %1001 = vmatprep.subr.bf16.mxu0 0
  %1002 = vmatpush1.bf16.msra.mxu0 0
  %1003 = vmatprep.subr.bf16.mxu0 0
  %1004 = vmatpush1.bf16.msra.mxu0 0
  %1005 = vmatprep.subr.bf16.mxu0 0
  %1006 = vmatpush1.bf16.msra.mxu0 0
  %1007 = vmatprep.subr.bf16.mxu0 0
  %1008 = vmatpush1.bf16.msra.mxu0 0
  %1009 = vmatprep.subr.bf16.mxu0 0
  %1010 = vmatpush1.bf16.msra.mxu0 0
  %1011 = vmatprep.subr.bf16.mxu0 0
  %1012 = vmatpush1.bf16.msra.mxu0 0
  %1013 = vmatprep.subr.bf16.mxu0 0
  %1014 = vmatpush1.bf16.msra.mxu0 0
  %1015 = vmatprep.subr.bf16.mxu0 0
  %1016 = vmatpush1.bf16.msra.mxu0 0
  %1017 = vmatprep.subr.bf16.mxu0 0
  %1018 = vmatpush1.bf16.msra.mxu0 0
  %1019 = vmatprep.subr.bf16.mxu0 0
  %1020 = vmatpush1.bf16.msra.mxu0 0
  %1021 = vmatprep.subr.bf16.mxu0 0
  %1022 = vmatpush1.bf16.msra.mxu0 0
  %1023 = vmatprep.subr.bf16.mxu0 0
  %1024 = vmatpush1.bf16.msra.mxu0 0
  %1025 = vmatprep.subr.bf16.mxu0 0
  %1026 = vmatpush1.bf16.msra.mxu0 0
  %1027 = vmatprep.subr.bf16.mxu0 0
  %1028 = vmatpush1.bf16.msra.mxu0 0
  %1029 = vmatprep.subr.bf16.mxu0 0
  %1030 = vmatpush1.bf16.msra.mxu0 0
  %1031 = vmatprep.mubr.bf16.mxu0 0
  %1032 = vmatmul.mubr.bf16.gmra.mrb[0].mxu0 %v990
  %v1033 = vpop.f32.mrb[0].mxu0
  %v1034 = vadd.f32 0.0, %v1033
  %v1035 = vpop.f32.mrb[0].mxu0
  %v1036 = vpop.f32.mrb[0].mxu0
  %v1037 = vadd.f32 0.0, %v1036
  %v1038 = vpop.f32.mrb[0].mxu0
  %1039 = vmatprep.mubr.bf16.mxu0 0
  %1040 = vmatmul.mubr.bf16.gmra.mrb[0].mxu0 %v993
  %v1041 = vpop.f32.mrb[0].mxu0
  %v1042 = vadd.f32 0.0, %v1041
  %v1043 = vpop.f32.mrb[0].mxu0
  %v1044 = vpop.f32.mrb[0].mxu0
  %v1045 = vadd.f32 0.0, %v1044
  %v1046 = vpop.f32.mrb[0].mxu0
  %1047 = vdwg.mxu0
  %v1048 = vld [vmem:[%s2 + $0x80] sm:$0xf]
  %v1049 = vld [vmem:[%s2 + $0x84] sm:$0xf]
  %v1050 = vld [vmem:[%s2 + $0x88] sm:$0xf]
  %v1051 = vld [vmem:[%s2 + $0x8c] sm:$0xf]
  %v1052 = vpack.c.bf16 %v1037, %v1034
  %v1053 = vpack.c.bf16 %v1045, %v1042
  %v1058 = vunpack.c.l.b16 %v1048
  %v1059 = vunpack.c.l.b16 %v1049
  %v1060 = vunpack.c.l.b16 %v1050
  %v1061 = vunpack.c.l.b16 %v1051
  %v1062 = vpack.c.b16 %v1059, %v1058
  %v1063 = vpack.c.b16 %v1061, %v1060
  %v1067 = vsel %vm185, %v1052, 0
  %v1070 = vsel %vm185, %v1053, 0
  %1072 = vmatprep.subr.bf16.mxu0 0
  %1073 = vmatpush1.bf16.msra.mxu0 %v1062
  %1074 = vmatprep.subr.bf16.mxu0 0
  %1075 = vmatpush1.bf16.msra.mxu0 %v1063
  %1076 = vmatprep.subr.bf16.mxu0 0
  %1077 = vmatpush1.bf16.msra.mxu0 0
  %1078 = vmatprep.subr.bf16.mxu0 0
  %1079 = vmatpush1.bf16.msra.mxu0 0
  %1080 = vmatprep.subr.bf16.mxu0 0
  %1081 = vmatpush1.bf16.msra.mxu0 0
  %1082 = vmatprep.subr.bf16.mxu0 0
  %1083 = vmatpush1.bf16.msra.mxu0 0
  %1084 = vmatprep.subr.bf16.mxu0 0
  %1085 = vmatpush1.bf16.msra.mxu0 0
  %1086 = vmatprep.subr.bf16.mxu0 0
  %1087 = vmatpush1.bf16.msra.mxu0 0
  %1088 = vmatprep.subr.bf16.mxu0 0
  %1089 = vmatpush1.bf16.msra.mxu0 0
  %1090 = vmatprep.subr.bf16.mxu0 0
  %1091 = vmatpush1.bf16.msra.mxu0 0
  %1092 = vmatprep.subr.bf16.mxu0 0
  %1093 = vmatpush1.bf16.msra.mxu0 0
  %1094 = vmatprep.subr.bf16.mxu0 0
  %1095 = vmatpush1.bf16.msra.mxu0 0
  %1096 = vmatprep.subr.bf16.mxu0 0
  %1097 = vmatpush1.bf16.msra.mxu0 0
  %1098 = vmatprep.subr.bf16.mxu0 0
  %1099 = vmatpush1.bf16.msra.mxu0 0
  %1100 = vmatprep.subr.bf16.mxu0 0
  %1101 = vmatpush1.bf16.msra.mxu0 0
  %1102 = vmatprep.subr.bf16.mxu0 0
  %1103 = vmatpush1.bf16.msra.mxu0 0
  %1104 = vmatprep.mubr.bf16.mxu0 0
  %1105 = vmatmul.mubr.bf16.gmra.mrb[0].mxu0 %v1067
  %v1106 = vpop.f32.mrb[0].mxu0
  %v1107 = vadd.f32 0.0, %v1106
  %v1108 = vpop.f32.mrb[0].mxu0
  %v1109 = vpop.f32.mrb[0].mxu0
  %v1110 = vadd.f32 0.0, %v1109
  %v1111 = vpop.f32.mrb[0].mxu0
  %1112 = vmatprep.mubr.bf16.mxu0 0
  %1113 = vmatmul.mubr.bf16.gmra.mrb[0].mxu0 %v1070
  %v1114 = vpop.f32.mrb[0].mxu0
  %v1115 = vadd.f32 0.0, %v1114
  %v1116 = vpop.f32.mrb[0].mxu0
  %v1117 = vpop.f32.mrb[0].mxu0
  %v1118 = vadd.f32 0.0, %v1117
  %v1119 = vpop.f32.mrb[0].mxu0
  %1120 = vdwg.mxu0
  %v1121 = vadd.f32 %v246, %v1107
  %v1122 = vadd.f32 %v247, %v1110
  %v1123 = vadd.f32 %v248, %v1115
  %v1124 = vadd.f32 %v249, %v1118
  %v1125 = vld [vmem:[%s4 + $0x9] sm:$0x1]
  %v1126 = vlaneseq
  %v1127 = vshrl.u32 %v1126, 7
  %v1128 = vsub.s32 0, %v1127
  %v1129 = vrot.slane %v1125, %v1128
  %v1130 = vadd.f32 %v1121, %v1129
  %v1131 = vadd.f32 %v1122, %v1129
  %v1132 = vadd.f32 %v1123, %v1129
  %v1133 = vadd.f32 %v1124, %v1129
  %v1134 = vld [vmem:[%s3 + $0x30] sm:$0xf]
  %v1135 = vld [vmem:[%s3 + $0x34] sm:$0xf]
  %v1136 = vld [vmem:[%s3 + $0x38] sm:$0xf]
  %v1137 = vld [vmem:[%s3 + $0x3c] sm:$0xf]
  %v1138 = vpack.c.bf16 %v1131, %v1130
  %v1139 = vpack.c.bf16 %v1133, %v1132
  %v1140 = vld [vmem:[%s4 + $0xa] sm:$0x1]
  %v1141 = vlaneseq
  %v1142 = vshrl.u32 %v1141, 7
  %v1143 = vsub.s32 0, %v1142
  %v1144 = vrot.slane %v1140, %v1143
  %v1149 = vunpack.c.l.b16 %v1134
  %v1150 = vunpack.c.l.b16 %v1135
  %v1151 = vunpack.c.l.b16 %v1136
  %v1152 = vunpack.c.l.b16 %v1137
  %v1153 = vpack.c.b16 %v1150, %v1149
  %v1154 = vpack.c.b16 %v1152, %v1151
  %v1158 = vsel %vm185, %v1138, 0
  %v1161 = vsel %vm185, %v1139, 0
  %1163 = vmatprep.subr.bf16.mxu0 0
  %1164 = vmatpush1.bf16.msra.mxu0 %v1153
  %1165 = vmatprep.subr.bf16.mxu0 0
  %1166 = vmatpush1.bf16.msra.mxu0 %v1154
  %1167 = vmatprep.subr.bf16.mxu0 0
  %1168 = vmatpush1.bf16.msra.mxu0 0
  %1169 = vmatprep.subr.bf16.mxu0 0
  %1170 = vmatpush1.bf16.msra.mxu0 0
  %1171 = vmatprep.subr.bf16.mxu0 0
  %1172 = vmatpush1.bf16.msra.mxu0 0
  %1173 = vmatprep.subr.bf16.mxu0 0
  %1174 = vmatpush1.bf16.msra.mxu0 0
  %1175 = vmatprep.subr.bf16.mxu0 0
  %1176 = vmatpush1.bf16.msra.mxu0 0
  %1177 = vmatprep.subr.bf16.mxu0 0
  %1178 = vmatpush1.bf16.msra.mxu0 0
  %1179 = vmatprep.subr.bf16.mxu0 0
  %1180 = vmatpush1.bf16.msra.mxu0 0
  %1181 = vmatprep.subr.bf16.mxu0 0
  %1182 = vmatpush1.bf16.msra.mxu0 0
  %1183 = vmatprep.subr.bf16.mxu0 0
  %1184 = vmatpush1.bf16.msra.mxu0 0
  %1185 = vmatprep.subr.bf16.mxu0 0
  %1186 = vmatpush1.bf16.msra.mxu0 0
  %1187 = vmatprep.subr.bf16.mxu0 0
  %1188 = vmatpush1.bf16.msra.mxu0 0
  %1189 = vmatprep.subr.bf16.mxu0 0
  %1190 = vmatpush1.bf16.msra.mxu0 0
  %1191 = vmatprep.subr.bf16.mxu0 0
  %1192 = vmatpush1.bf16.msra.mxu0 0
  %1193 = vmatprep.subr.bf16.mxu0 0
  %1194 = vmatpush1.bf16.msra.mxu0 0
  %1195 = vmatprep.mubr.bf16.mxu0 0
  %1196 = vmatmul.mubr.bf16.gmra.mrb[0].mxu0 %v1158
  %v1197 = vpop.f32.mrb[0].mxu0
  %v1198 = vadd.f32 %v1144, %v1197
  %v1199 = vpop.f32.mrb[0].mxu0
  %v1200 = vpop.f32.mrb[0].mxu0
  %v1201 = vadd.f32 %v1144, %v1200
  %v1202 = vpop.f32.mrb[0].mxu0
  %1203 = vmatprep.mubr.bf16.mxu0 0
  %1204 = vmatmul.mubr.bf16.gmra.mrb[0].mxu0 %v1161
  %v1205 = vpop.f32.mrb[0].mxu0
  %v1206 = vadd.f32 %v1144, %v1205
  %v1207 = vpop.f32.mrb[0].mxu0
  %v1208 = vpop.f32.mrb[0].mxu0
  %v1209 = vadd.f32 %v1144, %v1208
  %v1210 = vpop.f32.mrb[0].mxu0
  %1211 = vdwg.mxu0
  %v1212 = vmul.f32 %v1198, %v1198
  %v1213 = vmul.f32 %v1201, %v1201
  %v1214 = vmul.f32 %v1206, %v1206
  %v1215 = vmul.f32 %v1209, %v1209
  %v1216 = vmul.f32 %v1198, %v1212
  %v1217 = vmul.f32 %v1201, %v1213
  %v1218 = vmul.f32 %v1206, %v1214
  %v1219 = vmul.f32 %v1209, %v1215
  %v1220 = vmul.f32 %v1216, 0.044715
  %v1221 = vmul.f32 %v1217, 0.044715
  %v1222 = vmul.f32 %v1218, 0.044715
  %v1223 = vmul.f32 %v1219, 0.044715
  %v1224 = vadd.f32 %v1198, %v1220
  %v1225 = vadd.f32 %v1201, %v1221
  %v1226 = vadd.f32 %v1206, %v1222
  %v1227 = vadd.f32 %v1209, %v1223
  %v1228 = vmul.f32 %v1224, 0.7978846
  %v1229 = vmul.f32 %v1225, 0.7978846
  %v1230 = vmul.f32 %v1226, 0.7978846
  %v1231 = vmul.f32 %v1227, 0.7978846
  %v1232 = vtanh.pop %v1228
  %v1233 = vtanh.pop %v1229
  %v1234 = vtanh.pop %v1230
  %v1235 = vtanh.pop %v1231
  %v1236 = vadd.f32 %v1232, 1.0
  %v1237 = vadd.f32 %v1233, 1.0
  %v1238 = vadd.f32 %v1234, 1.0
  %v1239 = vadd.f32 %v1235, 1.0
  %v1240 = vmul.f32 %v1236, 0.5
  %v1241 = vmul.f32 %v1237, 0.5
  %v1242 = vmul.f32 %v1238, 0.5
  %v1243 = vmul.f32 %v1239, 0.5
  %v1244 = vmul.f32 %v1198, %v1240
  %v1245 = vmul.f32 %v1201, %v1241
  %v1246 = vmul.f32 %v1206, %v1242
  %v1247 = vmul.f32 %v1209, %v1243
  %v1248 = vld [vmem:[%s5 + $0x78] sm:$0x3]
  %v1249 = vpack.c.bf16 %v1248, %v1248
  %v1251 = vsel %vm963, %v1249, 0
  %v1253 = vsel %vm995, %v817, 0
  %1255 = vmatprep.subr.bf16.mxu0 0
  %1256 = vmatpush1.bf16.msra.mxu0 %v1253
  %1257 = vmatprep.subr.bf16.mxu0 0
  %1258 = vmatpush1.bf16.msra.mxu0 0
  %1259 = vmatprep.subr.bf16.mxu0 0
  %1260 = vmatpush1.bf16.msra.mxu0 0
  %1261 = vmatprep.subr.bf16.mxu0 0
  %1262 = vmatpush1.bf16.msra.mxu0 0
  %1263 = vmatprep.subr.bf16.mxu0 0
  %1264 = vmatpush1.bf16.msra.mxu0 0
  %1265 = vmatprep.subr.bf16.mxu0 0
  %1266 = vmatpush1.bf16.msra.mxu0 0
  %1267 = vmatprep.subr.bf16.mxu0 0
  %1268 = vmatpush1.bf16.msra.mxu0 0
  %1269 = vmatprep.subr.bf16.mxu0 0
  %1270 = vmatpush1.bf16.msra.mxu0 0
  %1271 = vmatprep.subr.bf16.mxu0 0
  %1272 = vmatpush1.bf16.msra.mxu0 0
  %1273 = vmatprep.subr.bf16.mxu0 0
  %1274 = vmatpush1.bf16.msra.mxu0 0
  %1275 = vmatprep.subr.bf16.mxu0 0
  %1276 = vmatpush1.bf16.msra.mxu0 0
  %1277 = vmatprep.subr.bf16.mxu0 0
  %1278 = vmatpush1.bf16.msra.mxu0 0
  %1279 = vmatprep.subr.bf16.mxu0 0
  %1280 = vmatpush1.bf16.msra.mxu0 0
  %1281 = vmatprep.subr.bf16.mxu0 0
  %1282 = vmatpush1.bf16.msra.mxu0 0
  %1283 = vmatprep.subr.bf16.mxu0 0
  %1284 = vmatpush1.bf16.msra.mxu0 0
  %1285 = vmatprep.subr.bf16.mxu0 0
  %1286 = vmatpush1.bf16.msra.mxu0 0
  %1287 = vmatprep.mubr.bf16.mxu0 0
  %1288 = vmatmul.mubr.bf16.gmra.mrb[0].mxu0 %v1251
  %v1289 = vpop.f32.mrb[0].mxu0
  %v1290 = vadd.f32 0.0, %v1289
  %v1291 = vpop.f32.mrb[0].mxu0
  %v1292 = vpop.f32.mrb[0].mxu0
  %v1293 = vpop.f32.mrb[0].mxu0
  %1294 = vdwg.mxu0
  %v1295 = vld [vmem:[%s3 + $0x40] sm:$0xf]
  %v1296 = vld [vmem:[%s3 + $0x44] sm:$0xf]
  %v1297 = vld [vmem:[%s3 + $0x48] sm:$0xf]
  %v1298 = vld [vmem:[%s3 + $0x4c] sm:$0xf]
  %v1299 = vpack.c.bf16 %v1290, %v1290
  %v1300 = vld [vmem:[%s4 + $0xb] sm:$0x1]
  %v1301 = vlaneseq
  %v1302 = vshrl.u32 %v1301, 7
  %v1303 = vsub.s32 0, %v1302
  %v1304 = vrot.slane %v1300, %v1303
  %v1309 = vunpack.c.l.b16 %v1295
  %v1310 = vunpack.c.l.b16 %v1296
  %v1311 = vunpack.c.l.b16 %v1297
  %v1312 = vunpack.c.l.b16 %v1298
  %v1313 = vpack.c.b16 %v1310, %v1309
  %v1314 = vpack.c.b16 %v1312, %v1311
  %v1318 = vsel %vm185, %v1299, 0
  %1320 = vmatprep.subr.bf16.mxu0 0
  %1321 = vmatpush1.bf16.msra.mxu0 %v1313
  %1322 = vmatprep.subr.bf16.mxu0 0
  %1323 = vmatpush1.bf16.msra.mxu0 %v1314
  %1324 = vmatprep.subr.bf16.mxu0 0
  %1325 = vmatpush1.bf16.msra.mxu0 0
  %1326 = vmatprep.subr.bf16.mxu0 0
  %1327 = vmatpush1.bf16.msra.mxu0 0
  %1328 = vmatprep.subr.bf16.mxu0 0
  %1329 = vmatpush1.bf16.msra.mxu0 0
  %1330 = vmatprep.subr.bf16.mxu0 0
  %1331 = vmatpush1.bf16.msra.mxu0 0
  %1332 = vmatprep.subr.bf16.mxu0 0
  %1333 = vmatpush1.bf16.msra.mxu0 0
  %1334 = vmatprep.subr.bf16.mxu0 0
  %1335 = vmatpush1.bf16.msra.mxu0 0
  %1336 = vmatprep.subr.bf16.mxu0 0
  %1337 = vmatpush1.bf16.msra.mxu0 0
  %1338 = vmatprep.subr.bf16.mxu0 0
  %1339 = vmatpush1.bf16.msra.mxu0 0
  %1340 = vmatprep.subr.bf16.mxu0 0
  %1341 = vmatpush1.bf16.msra.mxu0 0
  %1342 = vmatprep.subr.bf16.mxu0 0
  %1343 = vmatpush1.bf16.msra.mxu0 0
  %1344 = vmatprep.subr.bf16.mxu0 0
  %1345 = vmatpush1.bf16.msra.mxu0 0
  %1346 = vmatprep.subr.bf16.mxu0 0
  %1347 = vmatpush1.bf16.msra.mxu0 0
  %1348 = vmatprep.subr.bf16.mxu0 0
  %1349 = vmatpush1.bf16.msra.mxu0 0
  %1350 = vmatprep.subr.bf16.mxu0 0
  %1351 = vmatpush1.bf16.msra.mxu0 0
  %1352 = vmatprep.mubr.bf16.mxu0 0
  %1353 = vmatmul.mubr.bf16.gmra.mrb[0].mxu0 %v1318
  %v1354 = vpop.f32.mrb[0].mxu0
  %v1355 = vadd.f32 %v1304, %v1354
  %v1356 = vpop.f32.mrb[0].mxu0
  %v1357 = vpop.f32.mrb[0].mxu0
  %v1358 = vpop.f32.mrb[0].mxu0
  %1359 = vdwg.mxu0
  %v1360 = vld [vmem:[%s5 + $0x58] sm:$0xff]
  %v1361 = vld [vmem:[%s5 + $0x60] sm:$0xff]
  %v1362 = vld [vmem:[%s5 + $0x68] sm:$0xff]
  %v1363 = vld [vmem:[%s5 + $0x70] sm:$0xff]
  %v1364 = vpack.c.bf16 %v1361, %v1360
  %v1365 = vpack.c.bf16 %v1363, %v1362
  %v1366 = vpack.c.bf16 %v1355, %v1355
  %vm1367 = vcmask 15360
  %v1369 = vsel %vm1367, %v1364, 0
  %v1372 = vsel %vm1367, %v1365, 0
  %vm1374 = vcmask 1040384
  %v1376 = vsel %vm1374, %v1366, 0
  %1378 = vmatprep.subr.bf16.mxu0 0
  %1379 = vmatpush1.bf16.msra.mxu0 %v1376
  %1380 = vmatprep.subr.bf16.mxu0 0
  %1381 = vmatpush1.bf16.msra.mxu0 0
  %1382 = vmatprep.subr.bf16.mxu0 0
  %1383 = vmatpush1.bf16.msra.mxu0 0
  %1384 = vmatprep.subr.bf16.mxu0 0
  %1385 = vmatpush1.bf16.msra.mxu0 0
  %1386 = vmatprep.subr.bf16.mxu0 0
  %1387 = vmatpush1.bf16.msra.mxu0 0
  %1388 = vmatprep.subr.bf16.mxu0 0
  %1389 = vmatpush1.bf16.msra.mxu0 0
  %1390 = vmatprep.subr.bf16.mxu0 0
  %1391 = vmatpush1.bf16.msra.mxu0 0
  %1392 = vmatprep.subr.bf16.mxu0 0
  %1393 = vmatpush1.bf16.msra.mxu0 0
  %1394 = vmatprep.subr.bf16.mxu0 0
  %1395 = vmatpush1.bf16.msra.mxu0 0
  %1396 = vmatprep.subr.bf16.mxu0 0
  %1397 = vmatpush1.bf16.msra.mxu0 0
  %1398 = vmatprep.subr.bf16.mxu0 0
  %1399 = vmatpush1.bf16.msra.mxu0 0
  %1400 = vmatprep.subr.bf16.mxu0 0
  %1401 = vmatpush1.bf16.msra.mxu0 0
  %1402 = vmatprep.subr.bf16.mxu0 0
  %1403 = vmatpush1.bf16.msra.mxu0 0
  %1404 = vmatprep.subr.bf16.mxu0 0
  %1405 = vmatpush1.bf16.msra.mxu0 0
  %1406 = vmatprep.subr.bf16.mxu0 0
  %1407 = vmatpush1.bf16.msra.mxu0 0
  %1408 = vmatprep.subr.bf16.mxu0 0
  %1409 = vmatpush1.bf16.msra.mxu0 0
  %1410 = vmatprep.mubr.bf16.mxu0 0
  %1411 = vmatmul.mubr.bf16.gmra.mrb[0].mxu0 %v1369
  %v1412 = vpop.f32.mrb[0].mxu0
  %v1413 = vadd.f32 0.0, %v1412
  %v1414 = vpop.f32.mrb[0].mxu0
  %v1415 = vpop.f32.mrb[0].mxu0
  %v1416 = vadd.f32 0.0, %v1415
  %v1417 = vpop.f32.mrb[0].mxu0
  %1418 = vmatprep.mubr.bf16.mxu0 0
  %1419 = vmatmul.mubr.bf16.gmra.mrb[0].mxu0 %v1372
  %v1420 = vpop.f32.mrb[0].mxu0
  %v1421 = vadd.f32 0.0, %v1420
  %v1422 = vpop.f32.mrb[0].mxu0
  %v1423 = vpop.f32.mrb[0].mxu0
  %v1424 = vadd.f32 0.0, %v1423
  %v1425 = vpop.f32.mrb[0].mxu0
  %1426 = vdwg.mxu0
  %v1427 = vmul.f32 %v1244, %v1413
  %v1428 = vmul.f32 %v1245, %v1416
  %v1429 = vmul.f32 %v1246, %v1421
  %v1430 = vmul.f32 %v1247, %v1424
  %v1431 = vld [vmem:[%s5 + $0x80] sm:$0xff]
  %v1432 = vld [vmem:[%s5 + $0x88] sm:$0xff]
  %v1433 = vld [vmem:[%s5 + $0x90] sm:$0xff]
  %v1434 = vld [vmem:[%s5 + $0x98] sm:$0xff]
  %v1435 = vld [vmem:[%s5 + $0xa0] sm:$0xff]
  %v1436 = vld [vmem:[%s5 + $0xa8] sm:$0xff]
  %v1437 = vld [vmem:[%s5 + $0xb0] sm:$0xff]
  %v1438 = vld [vmem:[%s5 + $0xb8] sm:$0xff]
  %v1439 = vpack.c.bf16 %v1428, %v1427
  %v1440 = vpack.c.bf16 %v1430, %v1429
  %v1441 = vpack.c.bf16 %v1432, %v1431
  %v1442 = vpack.c.bf16 %v1434, %v1433
  %v1443 = vpack.c.bf16 %v1436, %v1435
  %v1444 = vpack.c.bf16 %v1438, %v1437
  %v1446 = vsel %vm70, %v1439, 0
  %v1449 = vsel %vm70, %v1440, 0
  %1451 = vmatprep.subr.bf16.mxu0 0
  %1452 = vmatpush1.bf16.msra.mxu0 %v1441
  %1453 = vmatprep.subr.bf16.mxu0 0
  %1454 = vmatpush1.bf16.msra.mxu0 %v1442
  %1455 = vmatprep.subr.bf16.mxu0 0
  %1456 = vmatpush1.bf16.msra.mxu0 %v1443
  %1457 = vmatprep.subr.bf16.mxu0 0
  %1458 = vmatpush1.bf16.msra.mxu0 %v1444
  %1459 = vmatprep.subr.bf16.mxu0 0
  %1460 = vmatpush1.bf16.msra.mxu0 0
  %1461 = vmatprep.subr.bf16.mxu0 0
  %1462 = vmatpush1.bf16.msra.mxu0 0
  %1463 = vmatprep.subr.bf16.mxu0 0
  %1464 = vmatpush1.bf16.msra.mxu0 0
  %1465 = vmatprep.subr.bf16.mxu0 0
  %1466 = vmatpush1.bf16.msra.mxu0 0
  %1467 = vmatprep.subr.bf16.mxu0 0
  %1468 = vmatpush1.bf16.msra.mxu0 0
  %1469 = vmatprep.subr.bf16.mxu0 0
  %1470 = vmatpush1.bf16.msra.mxu0 0
  %1471 = vmatprep.subr.bf16.mxu0 0
  %1472 = vmatpush1.bf16.msra.mxu0 0
  %1473 = vmatprep.subr.bf16.mxu0 0
  %1474 = vmatpush1.bf16.msra.mxu0 0
  %1475 = vmatprep.subr.bf16.mxu0 0
  %1476 = vmatpush1.bf16.msra.mxu0 0
  %1477 = vmatprep.subr.bf16.mxu0 0
  %1478 = vmatpush1.bf16.msra.mxu0 0
  %1479 = vmatprep.subr.bf16.mxu0 0
  %1480 = vmatpush1.bf16.msra.mxu0 0
  %1481 = vmatprep.subr.bf16.mxu0 0
  %1482 = vmatpush1.bf16.msra.mxu0 0
  %1483 = vmatprep.mubr.bf16.mxu0 0
  %1484 = vmatmul.mubr.bf16.gmra.mrb[0].mxu0 %v1446
  %v1485 = vpop.f32.mrb[0].mxu0
  %v1486 = vadd.f32 0.0, %v1485
  %v1487 = vpop.f32.mrb[0].mxu0
  %v1488 = vpop.f32.mrb[0].mxu0
  %v1489 = vadd.f32 0.0, %v1488
  %v1490 = vpop.f32.mrb[0].mxu0
  %1491 = vmatprep.mubr.bf16.mxu0 0
  %1492 = vmatmul.mubr.bf16.gmra.mrb[0].mxu0 %v1449
  %v1493 = vpop.f32.mrb[0].mxu0
  %v1494 = vadd.f32 0.0, %v1493
  %v1495 = vpop.f32.mrb[0].mxu0
  %v1496 = vpop.f32.mrb[0].mxu0
  %v1497 = vadd.f32 0.0, %v1496
  %v1498 = vpop.f32.mrb[0].mxu0
  %1499 = vdwg.mxu0
  %v1500 = vld [vmem:[%s6] sm:$0xff]
  %v1501 = vld [vmem:[%s6 + $0x8] sm:$0xff]
  %v1502 = vld [vmem:[%s6 + $0x10] sm:$0xff]
  %v1503 = vld [vmem:[%s6 + $0x18] sm:$0xff]
  %v1504 = vld [vmem:[%s6 + $0x20] sm:$0xff]
  %v1505 = vld [vmem:[%s6 + $0x28] sm:$0xff]
  %v1506 = vld [vmem:[%s6 + $0x30] sm:$0xff]
  %v1507 = vld [vmem:[%s6 + $0x38] sm:$0xff]
  %v1508 = vld [vmem:[%s6 + $0x40] sm:$0xff]
  %v1509 = vld [vmem:[%s6 + $0x48] sm:$0xff]
  %v1510 = vld [vmem:[%s6 + $0x50] sm:$0xff]
  %v1511 = vld [vmem:[%s6 + $0x58] sm:$0xff]
  %v1512 = vld [vmem:[%s6 + $0x60] sm:$0xff]
  %v1513 = vld [vmem:[%s6 + $0x68] sm:$0xff]
  %v1514 = vld [vmem:[%s6 + $0x70] sm:$0xff]
  %v1515 = vld [vmem:[%s6 + $0x78] sm:$0xff]
  %v1516 = vld [vmem:[%s6 + $0x80] sm:$0xff]
  %v1517 = vld [vmem:[%s6 + $0x88] sm:$0xff]
  %v1518 = vld [vmem:[%s6 + $0x90] sm:$0xff]
  %v1519 = vld [vmem:[%s6 + $0x98] sm:$0xff]
  %v1520 = vld [vmem:[%s6 + $0xa0] sm:$0xff]
  %v1521 = vld [vmem:[%s6 + $0xa8] sm:$0xff]
  %v1522 = vld [vmem:[%s6 + $0xb0] sm:$0xff]
  %v1523 = vld [vmem:[%s6 + $0xb8] sm:$0xff]
  %v1524 = vld [vmem:[%s6 + $0xc0] sm:$0xff]
  %v1525 = vld [vmem:[%s6 + $0xc8] sm:$0xff]
  %v1526 = vld [vmem:[%s6 + $0xd0] sm:$0xff]
  %v1527 = vld [vmem:[%s6 + $0xd8] sm:$0xff]
  %v1528 = vld [vmem:[%s6 + $0xe0] sm:$0xff]
  %v1529 = vld [vmem:[%s6 + $0xe8] sm:$0xff]
  %v1530 = vld [vmem:[%s6 + $0xf0] sm:$0xff]
  %v1531 = vld [vmem:[%s6 + $0xf8] sm:$0xff]
  %1533 = vset.pattern.permute.xlu0 0
  %1534 = vperm.xlu0 %1533, %v1486
  %v1535 = vpop.permute.xlu0 %1534
  %1538 = vset.pattern.permute.xlu0 0
  %1539 = vperm.xlu0 %1538, %v1489
  %v1540 = vpop.permute.xlu0 %1539
  %1543 = vset.pattern.permute.xlu0 0
  %1544 = vperm.xlu0 %1543, %v1494
  %v1545 = vpop.permute.xlu0 %1544
  %1548 = vset.pattern.permute.xlu0 0
  %1549 = vperm.xlu0 %1548, %v1497
  %v1550 = vpop.permute.xlu0 %1549
  %v1552 = vmul.f32 %v1535, %v1500
  %v1553 = vmul.f32 %v1535, %v1501
  %v1554 = vmul.f32 %v1540, %v1508
  %v1555 = vmul.f32 %v1540, %v1509
  %v1556 = vmul.f32 %v1545, %v1516
  %v1557 = vmul.f32 %v1545, %v1517
  %v1558 = vmul.f32 %v1550, %v1524
  %v1559 = vmul.f32 %v1550, %v1525
  %1560 = vset.pattern.permute.xlu0 1
  %1561 = vperm.xlu0 %1560, %v1486
  %v1562 = vpop.permute.xlu0 %1561
  %1564 = vset.pattern.permute.xlu0 1
  %1565 = vperm.xlu0 %1564, %v1489
  %v1566 = vpop.permute.xlu0 %1565
  %1568 = vset.pattern.permute.xlu0 1
  %1569 = vperm.xlu0 %1568, %v1494
  %v1570 = vpop.permute.xlu0 %1569
  %1572 = vset.pattern.permute.xlu0 1
  %1573 = vperm.xlu0 %1572, %v1497
  %v1574 = vpop.permute.xlu0 %1573
  %v1576 = vmul.f32 %v1562, %v1502
  %v1577 = vmul.f32 %v1562, %v1503
  %v1578 = vmul.f32 %v1566, %v1510
  %v1579 = vmul.f32 %v1566, %v1511
  %v1580 = vmul.f32 %v1570, %v1518
  %v1581 = vmul.f32 %v1570, %v1519
  %v1582 = vmul.f32 %v1574, %v1526
  %v1583 = vmul.f32 %v1574, %v1527
  %v1584 = vadd.f32 %v1552, %v1576
  %v1585 = vadd.f32 %v1553, %v1577
  %v1586 = vadd.f32 %v1554, %v1578
  %v1587 = vadd.f32 %v1555, %v1579
  %v1588 = vadd.f32 %v1556, %v1580
  %v1589 = vadd.f32 %v1557, %v1581
  %v1590 = vadd.f32 %v1558, %v1582
  %v1591 = vadd.f32 %v1559, %v1583
  %1592 = vset.pattern.permute.xlu0 2
  %1593 = vperm.xlu0 %1592, %v1486
  %v1594 = vpop.permute.xlu0 %1593
  %1596 = vset.pattern.permute.xlu0 2
  %1597 = vperm.xlu0 %1596, %v1489
  %v1598 = vpop.permute.xlu0 %1597
  %1600 = vset.pattern.permute.xlu0 2
  %1601 = vperm.xlu0 %1600, %v1494
  %v1602 = vpop.permute.xlu0 %1601
  %1604 = vset.pattern.permute.xlu0 2
  %1605 = vperm.xlu0 %1604, %v1497
  %v1606 = vpop.permute.xlu0 %1605
  %v1608 = vmul.f32 %v1594, %v1504
  %v1609 = vmul.f32 %v1594, %v1505
  %v1610 = vmul.f32 %v1598, %v1512
  %v1611 = vmul.f32 %v1598, %v1513
  %v1612 = vmul.f32 %v1602, %v1520
  %v1613 = vmul.f32 %v1602, %v1521
  %v1614 = vmul.f32 %v1606, %v1528
  %v1615 = vmul.f32 %v1606, %v1529
  %v1616 = vadd.f32 %v1584, %v1608
  %v1617 = vadd.f32 %v1585, %v1609
  %v1618 = vadd.f32 %v1586, %v1610
  %v1619 = vadd.f32 %v1587, %v1611
  %v1620 = vadd.f32 %v1588, %v1612
  %v1621 = vadd.f32 %v1589, %v1613
  %v1622 = vadd.f32 %v1590, %v1614
  %v1623 = vadd.f32 %v1591, %v1615
  %1624 = vset.pattern.permute.xlu0 3
  %1625 = vperm.xlu0 %1624, %v1486
  %v1626 = vpop.permute.xlu0 %1625
  %1628 = vset.pattern.permute.xlu0 3
  %1629 = vperm.xlu0 %1628, %v1489
  %v1630 = vpop.permute.xlu0 %1629
  %1632 = vset.pattern.permute.xlu0 3
  %1633 = vperm.xlu0 %1632, %v1494
  %v1634 = vpop.permute.xlu0 %1633
  %1636 = vset.pattern.permute.xlu0 3
  %1637 = vperm.xlu0 %1636, %v1497
  %v1638 = vpop.permute.xlu0 %1637
  %v1640 = vmul.f32 %v1626, %v1506
  %v1641 = vmul.f32 %v1626, %v1507
  %v1642 = vmul.f32 %v1630, %v1514
  %v1643 = vmul.f32 %v1630, %v1515
  %v1644 = vmul.f32 %v1634, %v1522
  %v1645 = vmul.f32 %v1634, %v1523
  %v1646 = vmul.f32 %v1638, %v1530
  %v1647 = vmul.f32 %v1638, %v1531
  %v1648 = vadd.f32 %v1616, %v1640
  %v1649 = vadd.f32 %v1617, %v1641
  %v1650 = vadd.f32 %v1618, %v1642
  %v1651 = vadd.f32 %v1619, %v1643
  %v1652 = vadd.f32 %v1620, %v1644
  %v1653 = vadd.f32 %v1621, %v1645
  %v1654 = vadd.f32 %v1622, %v1646
  %v1655 = vadd.f32 %v1623, %v1647
  %v1656 = vld [vmem:[%s5 + $0x50] sm:$0x3]
  %v1657 = vpack.c.bf16 %v1656, %v1656
  %v1658 = vpack.c.bf16 %v1650, %v1648
  %v1659 = vpack.c.bf16 %v1651, %v1649
  %v1660 = vpack.c.bf16 %v1654, %v1652
  %v1661 = vpack.c.bf16 %v1655, %v1653
  %v1663 = vsel %vm185, %v1657, 0
  %1665 = vmatprep.subr.bf16.mxu0 %v1659
  %1666 = vmatpush1.bf16.msra.mxu0 %v1658
  %1667 = vmatprep.subr.bf16.mxu0 %v1661
  %1668 = vmatpush1.bf16.msra.mxu0 %v1660
  %1669 = vmatprep.subr.bf16.mxu0 0
  %1670 = vmatpush1.bf16.msra.mxu0 0
  %1671 = vmatprep.subr.bf16.mxu0 0
  %1672 = vmatpush1.bf16.msra.mxu0 0
  %1673 = vmatprep.subr.bf16.mxu0 0
  %1674 = vmatpush1.bf16.msra.mxu0 0
  %1675 = vmatprep.subr.bf16.mxu0 0
  %1676 = vmatpush1.bf16.msra.mxu0 0
  %1677 = vmatprep.subr.bf16.mxu0 0
  %1678 = vmatpush1.bf16.msra.mxu0 0
  %1679 = vmatprep.subr.bf16.mxu0 0
  %1680 = vmatpush1.bf16.msra.mxu0 0
  %1681 = vmatprep.subr.bf16.mxu0 0
  %1682 = vmatpush1.bf16.msra.mxu0 0
  %1683 = vmatprep.subr.bf16.mxu0 0
  %1684 = vmatpush1.bf16.msra.mxu0 0
  %1685 = vmatprep.subr.bf16.mxu0 0
  %1686 = vmatpush1.bf16.msra.mxu0 0
  %1687 = vmatprep.subr.bf16.mxu0 0
  %1688 = vmatpush1.bf16.msra.mxu0 0
  %1689 = vmatprep.subr.bf16.mxu0 0
  %1690 = vmatpush1.bf16.msra.mxu0 0
  %1691 = vmatprep.subr.bf16.mxu0 0
  %1692 = vmatpush1.bf16.msra.mxu0 0
  %1693 = vmatprep.subr.bf16.mxu0 0
  %1694 = vmatpush1.bf16.msra.mxu0 0
  %1695 = vmatprep.subr.bf16.mxu0 0
  %1696 = vmatpush1.bf16.msra.mxu0 0
  %1697 = vmatprep.mubr.bf16.mxu0 0
  %1698 = vmatmul.mubr.bf16.gmra.mrb[0].mxu0 %v1663
  %v1699 = vpop.f32.mrb[0].mxu0
  %v1700 = vadd.f32 0.0, %v1699
  %v1701 = vpop.f32.mrb[0].mxu0
  %v1702 = vadd.f32 0.0, %v1701
  %v1703 = vpop.f32.mrb[0].mxu0
  %v1704 = vpop.f32.mrb[0].mxu0
  %1705 = vdwg.mxu0
  %v1708 = vcombine.low %v1700, %v1702
  %v1710 = vunpack.c.l.s4 1983009808
  %v1711 = vunpack.c.0.s8 %v1710
  %v1712 = vlaneseq
  %v1713 = vshrl.u32 %v1712, 7
  %v1714 = vsub.s32 %v1711, %v1713
  %v1715 = vrot.slane %v1708, %v1714
  %1717 = vst [vmem:[%s7] sm:$0xf] %v1715
  // Predicated region
  $region30: #{cellsam_forward.1} parent=0 // pred_check
    _
  $region31: #{cellsam_forward.1} parent=0 // pred_check_branch
    %1719 = sbr.rel (0) target = $region33
  $region32: #{cellsam_forward.1} parent=0 // pred_region
    _
  $region33: #{cellsam_forward.1} parent=0 // pred_fallthru
    _
  // Predicated region
  $region34: #{cellsam_forward.1} parent=0 // pred_check
    _
  $region35: #{cellsam_forward.1} parent=0 // pred_check_branch
    %1721 = sbr.rel (0) target = $region37
  $region36: #{cellsam_forward.1} parent=0 // pred_region
    _
  $region37: #{cellsam_forward.1} parent=0 // pred_fallthru
    _

</llo_original>
